<compile_context>
chip_gen: v7x
topology: tpu7x:2x2x1
jax: 0.10.0
libtpu: 0.0.40
codegen_flags: <defaults>
</compile_context>

<pallas_src>
import functools
import math

import jax
import jax.numpy as jnp
from jax.experimental import pallas as pl
from jax.experimental.pallas import tpu as pltpu

MODEL_DIM = 32
NUM_HEAD = 4
FF_DIM = 64
LN_EPS = 1e-6
NEG_INF = -1e30  # finite stand-in for float('-inf') in masked softmax


# ----------------------------- fused Pallas kernel ------------------------- #

def _encoder_layer_kernel(x_ref, keep_ref, sbias_ref,
                          wqkv_ref, wo_ref, w1_ref, w2_ref, vecs_ref,
                          o_ref,
                          qs_ref, ks_ref, vs_ref, cs_ref,
                          *, num_head):
    """Full encoder layer for the whole (batch*seq) slab, entirely in VMEM.

    vecs_ref rows: 0=bqkv(3D, scale folded into bq) 1=bo(D) 2=b1(F) 3=b2(D)
                   4=ln1_g 5=ln1_b 6=ln2_g 7=ln2_b   (each padded to 128 lanes)
    """
    f32 = jnp.float32
    x = x_ref[...]                        # (BT, D) f32
    keep = keep_ref[...]                  # (BT, 1) f32, 1.0 = keep row
    BT, D = x.shape
    H = num_head
    dh = D // H
    F = w1_ref.shape[1]
    cdt = wqkv_ref.dtype                  # MXU operand dtype (bf16 on v6e/v7x)

    # ---- fused QKV projection: ONE (BT,D)@(D,3D) MXU pass ---------------------
    # q/k/v padded rows are zeroed by `keep` (== the three masked_fill(.,0.0)).
    qkv = (jnp.dot(x.astype(cdt), wqkv_ref[...], preferred_element_type=f32)
           + vecs_ref[0:1, :3 * D]) * keep                      # (BT, 3D) f32

    # ---- stack heads on the sublane axis: (H*BT, dh), head-major rows ---------
    # Cheap static VMEM stores (data movement only, no matmuls); this collapses
    # the per-head matmul loop into single MXU passes below.
    for h in range(H):
        qs_ref[h * BT:(h + 1) * BT, :] = qkv[:, h * dh:(h + 1) * dh]
        ks_ref[h * BT:(h + 1) * BT, :] = qkv[:, D + h * dh:D + (h + 1) * dh]
        vs_ref[h * BT:(h + 1) * BT, :] = qkv[:, 2 * D + h * dh:2 * D + (h + 1) * dh]
    q = qs_ref[...]                       # (H*BT, dh)
    k = ks_ref[...]
    v = vs_ref[...]

    # ---- ONE block-diagonal score matmul + softmax + ONE P@V ------------------
    # sbias is 0 where query/key share (head, batch) and the key is not padded,
    # NEG_INF elsewhere (block-diag structure + padding mask in one add).
    s = jax.lax.dot_general(q.astype(cdt), k.astype(cdt),
                            (((1,), (1,)), ((), ())),
                            preferred_element_type=f32)         # (H*BT, H*BT)
    s = s + sbias_ref[...]
    s = s - jnp.max(s, axis=-1, keepdims=True)
    p = jnp.exp(s)
    p = p * pl.reciprocal(jnp.sum(p, axis=-1, keepdims=True), approx=True)
    ctx = jnp.dot(p.astype(cdt), v.astype(cdt),
                  preferred_element_type=f32)                   # (H*BT, dh)

    # ---- un-stack heads back onto lanes, ONE (BT,D)@(D,D) output projection ---
    for h in range(H):
        cs_ref[:, h * dh:(h + 1) * dh] = ctx[h * BT:(h + 1) * BT, :]
    attn = (jnp.dot(cs_ref[...].astype(cdt), wo_ref[...],
                    preferred_element_type=f32)
            + vecs_ref[1:2, :D]) * keep                         # masked_fill(q_mask, 0)

    # ---- residual + LayerNorm 1 ------------------------------------------------
    h1 = attn + x
    mu1 = jnp.mean(h1, axis=-1, keepdims=True)
    var1 = jnp.mean((h1 - mu1) ** 2, axis=-1, keepdims=True)
    o1 = ((h1 - mu1) * jax.lax.rsqrt(var1 + LN_EPS)
          * vecs_ref[4:5, :D] + vecs_ref[5:6, :D])

    # ---- position-wise FFN: w2(relu(w1(x))), padded rows zeroed ----------------
    ff = jnp.maximum(
        jnp.dot(o1.astype(cdt), w1_ref[...], preferred_element_type=f32)
        + vecs_ref[2:3, :F], 0.0)                               # (BT, F)
    ffo = (jnp.dot(ff.astype(cdt), w2_ref[...], preferred_element_type=f32)
           + vecs_ref[3:4, :D]) * keep                          # (BT, D)

    # ---- residual + LayerNorm 2 ------------------------------------------------
    h2 = ffo + o1
    mu2 = jnp.mean(h2, axis=-1, keepdims=True)
    var2 = jnp.mean((h2 - mu2) ** 2, axis=-1, keepdims=True)
    o_ref[...] = ((h2 - mu2) * jax.lax.rsqrt(var2 + LN_EPS)
                  * vecs_ref[6:7, :D] + vecs_ref[7:8, :D])


# ------------------------------ wrapper ------------------------------------ #

def transformer_encoder_layer(x, mask, params, *, compute_dtype=jnp.bfloat16):
    """x: (B, T, D) float32; mask: (B, T) bool, True == padded."""
    B, T, D = x.shape
    H = NUM_HEAD
    dh = D // H
    pa, pf = params["self_attn"], params["ffn"]
    F = pf["w1"].shape[1]
    BT = B * T
    HBT = H * BT

    # Fuse QKV weights; fold the 1/sqrt(dh) softmax scale into the Q projection.
    scale = 1.0 / math.sqrt(dh)
    wqkv = jnp.concatenate([pa["wq"] * scale, pa["wk"], pa["wv"]], axis=1)   # (D, 3D)
    bqkv = jnp.concatenate([pa["bq"] * scale, pa["bk"], pa["bv"]])           # (3D,)

    # Pack all bias / LayerNorm vectors into one (8, 128) lane-major block.
    def _row(v):
        v = v.astype(jnp.float32)
        return jnp.pad(v, (0, 128 - v.shape[0]))
    vecs = jnp.stack([_row(bqkv), _row(pa["bo"]), _row(pf["b1"]), _row(pf["b2"]),
                      _row(params["ln1_g"]), _row(params["ln1_b"]),
                      _row(params["ln2_g"]), _row(params["ln2_b"])])          # (8,128)

    keep = (1.0 - mask.astype(jnp.float32)).reshape(BT, 1)       # 1.0 = keep row

    # Additive score bias for the head-stacked (H*BT, H*BT) score matrix.
    # Row/col order is (head, batch, seq): idx = h*BT + b*T + t.
    idx = jnp.arange(HBT)
    h_i = idx // BT
    b_i = (idx // T) % B
    t_i = idx % T
    same = (h_i[:, None] == h_i[None, :]) & (b_i[:, None] == b_i[None, :])
    key_pad = mask[b_i, t_i]                                     # True = padded key
    sbias = jnp.where(same & ~key_pad[None, :], 0.0, NEG_INF).astype(jnp.float32)

    cdt = compute_dtype
    kernel = functools.partial(_encoder_layer_kernel, num_head=H)
    full = lambda shape: pl.BlockSpec(shape, lambda i: (0, 0))

    out = pl.pallas_call(
        kernel,
        out_shape=jax.ShapeDtypeStruct((BT, D), jnp.float32),
        grid=(1,),                                   # whole problem in one step
        in_specs=[
            full((BT, D)),         # x, flattened (batch*seq, D)
            full((BT, 1)),         # keep rows
            full((HBT, HBT)),      # additive score bias (block-diag + padding)
            full((D, 3 * D)),      # fused QKV weight (scale folded into Q)
            full((D, D)),          # output projection
            full((D, F)),          # FFN w1
            full((F, D)),          # FFN w2
            full((8, 128)),        # packed biases + LayerNorm params
        ],
        out_specs=full((BT, D)),
        scratch_shapes=[
            pltpu.VMEM((HBT, dh), jnp.float32),      # Q stacked head-major
            pltpu.VMEM((HBT, dh), jnp.float32),      # K stacked head-major
            pltpu.VMEM((HBT, dh), jnp.float32),      # V stacked head-major
            pltpu.VMEM((BT, D), jnp.float32),        # heads re-concatenated
        ],
        compiler_params=pltpu.CompilerParams(dimension_semantics=("arbitrary",)),
    )(x.reshape(BT, D), keep, sbias,
      wqkv.astype(cdt), pa["wo"].astype(cdt),
      pf["w1"].astype(cdt), pf["w2"].astype(cdt), vecs)
    return out.reshape(B, T, D)


# ------------------------------ JAX reference ------------------------------ #

def _mha_ref(x, mask, p):
    B, T, D = x.shape
    H, dh = NUM_HEAD, D // NUM_HEAD
    keep = 1.0 - mask.astype(jnp.float32)[:, :, None]
    q = (x @ p["wq"] + p["bq"]) * keep
    k = (x @ p["wk"] + p["bk"]) * keep
    v = (x @ p["wv"] + p["bv"]) * keep
    q = q.reshape(B, T, H, dh).transpose(0, 2, 1, 3)
    k = k.reshape(B, T, H, dh).transpose(0, 2, 1, 3)
    v = v.reshape(B, T, H, dh).transpose(0, 2, 1, 3)
    s = jnp.einsum('bhtd,bhsd->bhts', q, k) / math.sqrt(dh)
    m = jnp.broadcast_to(mask.astype(bool)[:, None, None, :], s.shape)
    s = jnp.where(m, NEG_INF, s)
    a = jax.nn.softmax(s, axis=-1)
    ctx = jnp.einsum('bhts,bhsd->bhtd', a, v).transpose(0, 2, 1, 3).reshape(B, T, D)
    return (ctx @ p["wo"] + p["bo"]) * keep


def _ln_ref(x, g, b):
    mu = jnp.mean(x, axis=-1, keepdims=True)
    var = jnp.mean((x - mu) ** 2, axis=-1, keepdims=True)
    return (x - mu) / jnp.sqrt(var + LN_EPS) * g + b


def encoder_ref(x, mask, params):
    a = _mha_ref(x, mask, params["self_attn"])
    o1 = _ln_ref(a + x, params["ln1_g"], params["ln1_b"])
    keep = 1.0 - mask.astype(jnp.float32)[:, :, None]
    p = params["ffn"]
    f = (jnp.maximum(o1 @ p["w1"] + p["b1"], 0.0) @ p["w2"] + p["b2"]) * keep
    return _ln_ref(f + o1, params["ln2_g"], params["ln2_b"])


# --------------------------------- main ------------------------------------ #

def _init_params(key):
    D, F = MODEL_DIM, FF_DIM
    ks = jax.random.split(key, 13)
    return {
        "self_attn": {
            "wq": jax.random.normal(ks[0], (D, D), jnp.float32) * 0.05,
            "bq": jax.random.normal(ks[1], (D,), jnp.float32) * 0.01,
            "wk": jax.random.normal(ks[2], (D, D), jnp.float32) * 0.05,
            "bk": jax.random.normal(ks[3], (D,), jnp.float32) * 0.01,
            "wv": jax.random.normal(ks[4], (D, D), jnp.float32) * 0.05,
            "bv": jax.random.normal(ks[5], (D,), jnp.float32) * 0.01,
            "wo": jax.random.normal(ks[6], (D, D), jnp.float32) * 0.05,
            "bo": jax.random.normal(ks[7], (D,), jnp.float32) * 0.01,
        },
        "ffn": {
            "w1": jax.random.normal(ks[8], (D, F), jnp.float32) * 0.05,
            "b1": jax.random.normal(ks[9], (F,), jnp.float32) * 0.01,
            "w2": jax.random.normal(ks[10], (F, D), jnp.float32) * 0.05,
            "b2": jax.random.normal(ks[11], (D,), jnp.float32) * 0.01,
        },
        "ln1_g": jnp.ones((D,), jnp.float32), "ln1_b": jnp.zeros((D,), jnp.float32),
        "ln2_g": jnp.ones((D,), jnp.float32), "ln2_b": jnp.zeros((D,), jnp.float32),
    }


if __name__ == "__main__":
    B, T, D = 2, 8, MODEL_DIM
    key = jax.random.PRNGKey(0)
    k1, k2 = jax.random.split(key)

    params = _init_params(k2)
    x = jax.random.normal(k1, (B, T, D), jnp.float32)
    # True == padded position
    mask = jnp.zeros((B, T), jnp.bool_).at[1, T - 2:].set(True)

    ref = encoder_ref(x, mask, params)

    # Exact-semantics path (f32 MXU operands); tolerance covers the approx
    # reciprocal in the softmax normalization.
    out_f32 = jax.block_until_ready(
        transformer_encoder_layer(x, mask, params, compute_dtype=jnp.float32))
    assert out_f32.shape == (B, T, D)
    assert jnp.allclose(out_f32, ref, atol=2e-3, rtol=2e-3), \
        "f32 kernel mismatch vs JAX reference"

    # Production path for v6e/v7x: bf16 MXU operands, f32 accumulation,
    # softmax and LayerNorm statistics.
    out_bf16 = jax.block_until_ready(
        transformer_encoder_layer(x, mask, params, compute_dtype=jnp.bfloat16))
    assert out_bf16.shape == (B, T, D)
    assert jnp.allclose(out_bf16, ref, atol=3e-2, rtol=3e-2), \
        "bf16 kernel mismatch vs JAX reference"

    # TODO(synk): dropout (train mode) and the MHA layer_cache incremental-decode
    # / use_subseq_mask paths are not modeled (eval-mode encoder forward only).
    print("KERNEL_OK")
</pallas_src>

<mosaic_0001>
module attributes {stable_mosaic.version = 11 : i64} {
  func.func @_encoder_layer_kernel(%arg0: i32, %arg1: memref<16x32xf32, #tpu.memory_space<vmem>>, %arg2: memref<16x1xf32, #tpu.memory_space<vmem>>, %arg3: memref<64x64xf32, #tpu.memory_space<vmem>>, %arg4: memref<32x96xf32, #tpu.memory_space<vmem>>, %arg5: memref<32x32xf32, #tpu.memory_space<vmem>>, %arg6: memref<32x64xf32, #tpu.memory_space<vmem>>, %arg7: memref<64x32xf32, #tpu.memory_space<vmem>>, %arg8: memref<8x128xf32, #tpu.memory_space<vmem>>, %arg9: memref<16x32xf32, #tpu.memory_space<vmem>>, %arg10: memref<64x8xf32, #tpu.memory_space<vmem>>, %arg11: memref<64x8xf32, #tpu.memory_space<vmem>>, %arg12: memref<64x8xf32, #tpu.memory_space<vmem>>, %arg13: memref<16x32xf32, #tpu.memory_space<vmem>>) attributes {dimension_semantics = [#tpu.dimension_semantics<arbitrary>], iteration_bounds = array<i64: 1>, scalar_prefetch = 0 : i64, scratch_operands = 4 : i64, tpu.core_type = #tpu.core_type<tc>, window_params = [{pipeline_mode = #tpu.pipeline_mode<synchronous>, transform_indices = @transform_0, window_bounds = array<i64: 16, 32>}, {pipeline_mode = #tpu.pipeline_mode<synchronous>, transform_indices = @transform_1, window_bounds = array<i64: 16, 1>}, {pipeline_mode = #tpu.pipeline_mode<synchronous>, transform_indices = @transform_2, window_bounds = array<i64: 64, 64>}, {pipeline_mode = #tpu.pipeline_mode<synchronous>, transform_indices = @transform_3, window_bounds = array<i64: 32, 96>}, {pipeline_mode = #tpu.pipeline_mode<synchronous>, transform_indices = @transform_4, window_bounds = array<i64: 32, 32>}, {pipeline_mode = #tpu.pipeline_mode<synchronous>, transform_indices = @transform_5, window_bounds = array<i64: 32, 64>}, {pipeline_mode = #tpu.pipeline_mode<synchronous>, transform_indices = @transform_6, window_bounds = array<i64: 64, 32>}, {pipeline_mode = #tpu.pipeline_mode<synchronous>, transform_indices = @transform_7, window_bounds = array<i64: 8, 128>}, {pipeline_mode = #tpu.pipeline_mode<synchronous>, transform_indices = @transform_8, window_bounds = array<i64: 16, 32>}]} {
    %c0 = arith.constant 0 : index
    %c0_0 = arith.constant 0 : index
    %0 = vector.load %arg1[%c0, %c0_0] : memref<16x32xf32, #tpu.memory_space<vmem>>, vector<16x32xf32>
    %c0_1 = arith.constant 0 : index
    %c0_2 = arith.constant 0 : index
    %1 = vector.load %arg2[%c0_1, %c0_2] : memref<16x1xf32, #tpu.memory_space<vmem>>, vector<16x1xf32>
    %c0_3 = arith.constant 0 : index
    %c0_4 = arith.constant 0 : index
    %2 = vector.load %arg4[%c0_3, %c0_4] : memref<32x96xf32, #tpu.memory_space<vmem>>, vector<32x96xf32>
    %cst = arith.constant dense<0.000000e+00> : vector<16x96xf32>
    %3 = tpu.matmul %0, %2, %cst {dimension_numbers = #tpu.dot_dimension_numbers<[1], [0], [0], [1], [0, 0, 1, 1], [], []>} : vector<16x32xf32>, vector<32x96xf32>, vector<16x96xf32> -> vector<16x96xf32>
    %c0_5 = arith.constant 0 : index
    %c0_6 = arith.constant 0 : index
    %4 = vector.load %arg8[%c0_5, %c0_6] : memref<8x128xf32, #tpu.memory_space<vmem>>, vector<1x96xf32>
    %5 = vector.broadcast %4 : vector<1x96xf32> to vector<16x96xf32>
    %6 = arith.addf %3, %5 : vector<16x96xf32>
    %7 = vector.broadcast %1 : vector<16x1xf32> to vector<16x96xf32>
    %8 = arith.mulf %6, %7 : vector<16x96xf32>
    %9 = vector.extract_strided_slice %8 {offsets = [0, 0], sizes = [16, 8], strides = [1, 1]} : vector<16x96xf32> to vector<16x8xf32>
    %c0_7 = arith.constant 0 : index
    %c0_8 = arith.constant 0 : index
    %10 = vector.load %arg10[%c0_7, %c0_8] : memref<64x8xf32, #tpu.memory_space<vmem>>, vector<16x8xf32>
    tpu.vector_store %arg10[%c0_7, %c0_8], %9 {strides = array<i32>} : memref<64x8xf32, #tpu.memory_space<vmem>>, vector<16x8xf32>,
    %11 = vector.extract_strided_slice %8 {offsets = [0, 32], sizes = [16, 8], strides = [1, 1]} : vector<16x96xf32> to vector<16x8xf32>
    %c0_9 = arith.constant 0 : index
    %c0_10 = arith.constant 0 : index
    %12 = vector.load %arg11[%c0_9, %c0_10] : memref<64x8xf32, #tpu.memory_space<vmem>>, vector<16x8xf32>
    tpu.vector_store %arg11[%c0_9, %c0_10], %11 {strides = array<i32>} : memref<64x8xf32, #tpu.memory_space<vmem>>, vector<16x8xf32>,
    %13 = vector.extract_strided_slice %8 {offsets = [0, 64], sizes = [16, 8], strides = [1, 1]} : vector<16x96xf32> to vector<16x8xf32>
    %c0_11 = arith.constant 0 : index
    %c0_12 = arith.constant 0 : index
    %14 = vector.load %arg12[%c0_11, %c0_12] : memref<64x8xf32, #tpu.memory_space<vmem>>, vector<16x8xf32>
    tpu.vector_store %arg12[%c0_11, %c0_12], %13 {strides = array<i32>} : memref<64x8xf32, #tpu.memory_space<vmem>>, vector<16x8xf32>,
    %15 = vector.extract_strided_slice %8 {offsets = [0, 8], sizes = [16, 8], strides = [1, 1]} : vector<16x96xf32> to vector<16x8xf32>
    %c16 = arith.constant 16 : index
    %c0_13 = arith.constant 0 : index
    %16 = vector.load %arg10[%c16, %c0_13] : memref<64x8xf32, #tpu.memory_space<vmem>>, vector<16x8xf32>
    tpu.vector_store %arg10[%c16, %c0_13], %15 {strides = array<i32>} : memref<64x8xf32, #tpu.memory_space<vmem>>, vector<16x8xf32>,
    %17 = vector.extract_strided_slice %8 {offsets = [0, 40], sizes = [16, 8], strides = [1, 1]} : vector<16x96xf32> to vector<16x8xf32>
    %c16_14 = arith.constant 16 : index
    %c0_15 = arith.constant 0 : index
    %18 = vector.load %arg11[%c16_14, %c0_15] : memref<64x8xf32, #tpu.memory_space<vmem>>, vector<16x8xf32>
    tpu.vector_store %arg11[%c16_14, %c0_15], %17 {strides = array<i32>} : memref<64x8xf32, #tpu.memory_space<vmem>>, vector<16x8xf32>,
    %19 = vector.extract_strided_slice %8 {offsets = [0, 72], sizes = [16, 8], strides = [1, 1]} : vector<16x96xf32> to vector<16x8xf32>
    %c16_16 = arith.constant 16 : index
    %c0_17 = arith.constant 0 : index
    %20 = vector.load %arg12[%c16_16, %c0_17] : memref<64x8xf32, #tpu.memory_space<vmem>>, vector<16x8xf32>
    tpu.vector_store %arg12[%c16_16, %c0_17], %19 {strides = array<i32>} : memref<64x8xf32, #tpu.memory_space<vmem>>, vector<16x8xf32>,
    %21 = vector.extract_strided_slice %8 {offsets = [0, 16], sizes = [16, 8], strides = [1, 1]} : vector<16x96xf32> to vector<16x8xf32>
    %c32 = arith.constant 32 : index
    %c0_18 = arith.constant 0 : index
    %22 = vector.load %arg10[%c32, %c0_18] : memref<64x8xf32, #tpu.memory_space<vmem>>, vector<16x8xf32>
    tpu.vector_store %arg10[%c32, %c0_18], %21 {strides = array<i32>} : memref<64x8xf32, #tpu.memory_space<vmem>>, vector<16x8xf32>,
    %23 = vector.extract_strided_slice %8 {offsets = [0, 48], sizes = [16, 8], strides = [1, 1]} : vector<16x96xf32> to vector<16x8xf32>
    %c32_19 = arith.constant 32 : index
    %c0_20 = arith.constant 0 : index
    %24 = vector.load %arg11[%c32_19, %c0_20] : memref<64x8xf32, #tpu.memory_space<vmem>>, vector<16x8xf32>
    tpu.vector_store %arg11[%c32_19, %c0_20], %23 {strides = array<i32>} : memref<64x8xf32, #tpu.memory_space<vmem>>, vector<16x8xf32>,
    %25 = vector.extract_strided_slice %8 {offsets = [0, 80], sizes = [16, 8], strides = [1, 1]} : vector<16x96xf32> to vector<16x8xf32>
    %c32_21 = arith.constant 32 : index
    %c0_22 = arith.constant 0 : index
    %26 = vector.load %arg12[%c32_21, %c0_22] : memref<64x8xf32, #tpu.memory_space<vmem>>, vector<16x8xf32>
    tpu.vector_store %arg12[%c32_21, %c0_22], %25 {strides = array<i32>} : memref<64x8xf32, #tpu.memory_space<vmem>>, vector<16x8xf32>,
    %27 = vector.extract_strided_slice %8 {offsets = [0, 24], sizes = [16, 8], strides = [1, 1]} : vector<16x96xf32> to vector<16x8xf32>
    %c48 = arith.constant 48 : index
    %c0_23 = arith.constant 0 : index
    %28 = vector.load %arg10[%c48, %c0_23] : memref<64x8xf32, #tpu.memory_space<vmem>>, vector<16x8xf32>
    tpu.vector_store %arg10[%c48, %c0_23], %27 {strides = array<i32>} : memref<64x8xf32, #tpu.memory_space<vmem>>, vector<16x8xf32>,
    %29 = vector.extract_strided_slice %8 {offsets = [0, 56], sizes = [16, 8], strides = [1, 1]} : vector<16x96xf32> to vector<16x8xf32>
    %c48_24 = arith.constant 48 : index
    %c0_25 = arith.constant 0 : index
    %30 = vector.load %arg11[%c48_24, %c0_25] : memref<64x8xf32, #tpu.memory_space<vmem>>, vector<16x8xf32>
    tpu.vector_store %arg11[%c48_24, %c0_25], %29 {strides = array<i32>} : memref<64x8xf32, #tpu.memory_space<vmem>>, vector<16x8xf32>,
    %31 = vector.extract_strided_slice %8 {offsets = [0, 88], sizes = [16, 8], strides = [1, 1]} : vector<16x96xf32> to vector<16x8xf32>
    %c48_26 = arith.constant 48 : index
    %c0_27 = arith.constant 0 : index
    %32 = vector.load %arg12[%c48_26, %c0_27] : memref<64x8xf32, #tpu.memory_space<vmem>>, vector<16x8xf32>
    tpu.vector_store %arg12[%c48_26, %c0_27], %31 {strides = array<i32>} : memref<64x8xf32, #tpu.memory_space<vmem>>, vector<16x8xf32>,
    %c0_28 = arith.constant 0 : index
    %c0_29 = arith.constant 0 : index
    %33 = vector.load %arg10[%c0_28, %c0_29] : memref<64x8xf32, #tpu.memory_space<vmem>>, vector<64x8xf32>
    %c0_30 = arith.constant 0 : index
    %c0_31 = arith.constant 0 : index
    %34 = vector.load %arg11[%c0_30, %c0_31] : memref<64x8xf32, #tpu.memory_space<vmem>>, vector<64x8xf32>
    %c0_32 = arith.constant 0 : index
    %c0_33 = arith.constant 0 : index
    %35 = vector.load %arg12[%c0_32, %c0_33] : memref<64x8xf32, #tpu.memory_space<vmem>>, vector<64x8xf32>
    %cst_34 = arith.constant dense<0.000000e+00> : vector<64x64xf32>
    %36 = tpu.matmul %33, %34, %cst_34 {dimension_numbers = #tpu.dot_dimension_numbers<[1], [1], [0], [0], [0, 0, 1, 0], [], []>} : vector<64x8xf32>, vector<64x8xf32>, vector<64x64xf32> -> vector<64x64xf32>
    %c0_35 = arith.constant 0 : index
    %c0_36 = arith.constant 0 : index
    %37 = vector.load %arg3[%c0_35, %c0_36] : memref<64x64xf32, #tpu.memory_space<vmem>>, vector<64x64xf32>
    %38 = arith.addf %36, %37 : vector<64x64xf32>
    %cst_37 = arith.constant dense<0xFF800000> : vector<64xf32>
    %39 = vector.multi_reduction <maximumf>, %38, %cst_37 [1] : vector<64x64xf32> to vector<64xf32>
    %40 = vector.shape_cast %39 : vector<64xf32> to vector<64x1xf32>
    %41 = vector.broadcast %40 : vector<64x1xf32> to vector<64x64xf32>
    %42 = arith.subf %38, %41 : vector<64x64xf32>
    %43 = math.exp %42 : vector<64x64xf32>
    %cst_38 = arith.constant dense<0.000000e+00> : vector<64xf32>
    %44 = vector.multi_reduction <add>, %43, %cst_38 [1] : vector<64x64xf32> to vector<64xf32>
    %45 = vector.shape_cast %44 : vector<64xf32> to vector<64x1xf32>
    %46 = tpu.reciprocal %45 {approx = true} : vector<64x1xf32> -> vector<64x1xf32>
    %47 = vector.broadcast %46 : vector<64x1xf32> to vector<64x64xf32>
    %48 = arith.mulf %43, %47 : vector<64x64xf32>
    %cst_39 = arith.constant dense<0.000000e+00> : vector<64x8xf32>
    %49 = tpu.matmul %48, %35, %cst_39 {dimension_numbers = #tpu.dot_dimension_numbers<[1], [0], [0], [1], [0, 0, 1, 1], [], []>} : vector<64x64xf32>, vector<64x8xf32>, vector<64x8xf32> -> vector<64x8xf32>
    %50 = vector.extract_strided_slice %49 {offsets = [0, 0], sizes = [16, 8], strides = [1, 1]} : vector<64x8xf32> to vector<16x8xf32>
    %c0_40 = arith.constant 0 : index
    %c0_41 = arith.constant 0 : index
    %51 = vector.load %arg13[%c0_40, %c0_41] : memref<16x32xf32, #tpu.memory_space<vmem>>, vector<16x8xf32>
    tpu.vector_store %arg13[%c0_40, %c0_41], %50 {strides = array<i32>} : memref<16x32xf32, #tpu.memory_space<vmem>>, vector<16x8xf32>,
    %52 = vector.extract_strided_slice %49 {offsets = [16, 0], sizes = [16, 8], strides = [1, 1]} : vector<64x8xf32> to vector<16x8xf32>
    %c0_42 = arith.constant 0 : index
    %c8 = arith.constant 8 : index
    %53 = vector.load %arg13[%c0_42, %c8] : memref<16x32xf32, #tpu.memory_space<vmem>>, vector<16x8xf32>
    tpu.vector_store %arg13[%c0_42, %c8], %52 {strides = array<i32>} : memref<16x32xf32, #tpu.memory_space<vmem>>, vector<16x8xf32>,
    %54 = vector.extract_strided_slice %49 {offsets = [32, 0], sizes = [16, 8], strides = [1, 1]} : vector<64x8xf32> to vector<16x8xf32>
    %c0_43 = arith.constant 0 : index
    %c16_44 = arith.constant 16 : index
    %55 = vector.load %arg13[%c0_43, %c16_44] : memref<16x32xf32, #tpu.memory_space<vmem>>, vector<16x8xf32>
    tpu.vector_store %arg13[%c0_43, %c16_44], %54 {strides = array<i32>} : memref<16x32xf32, #tpu.memory_space<vmem>>, vector<16x8xf32>,
    %56 = vector.extract_strided_slice %49 {offsets = [48, 0], sizes = [16, 8], strides = [1, 1]} : vector<64x8xf32> to vector<16x8xf32>
    %c0_45 = arith.constant 0 : index
    %c24 = arith.constant 24 : index
    %57 = vector.load %arg13[%c0_45, %c24] : memref<16x32xf32, #tpu.memory_space<vmem>>, vector<16x8xf32>
    tpu.vector_store %arg13[%c0_45, %c24], %56 {strides = array<i32>} : memref<16x32xf32, #tpu.memory_space<vmem>>, vector<16x8xf32>,
    %c0_46 = arith.constant 0 : index
    %c0_47 = arith.constant 0 : index
    %58 = vector.load %arg13[%c0_46, %c0_47] : memref<16x32xf32, #tpu.memory_space<vmem>>, vector<16x32xf32>
    %c0_48 = arith.constant 0 : index
    %c0_49 = arith.constant 0 : index
    %59 = vector.load %arg5[%c0_48, %c0_49] : memref<32x32xf32, #tpu.memory_space<vmem>>, vector<32x32xf32>
    %cst_50 = arith.constant dense<0.000000e+00> : vector<16x32xf32>
    %60 = tpu.matmul %58, %59, %cst_50 {dimension_numbers = #tpu.dot_dimension_numbers<[1], [0], [0], [1], [0, 0, 1, 1], [], []>} : vector<16x32xf32>, vector<32x32xf32>, vector<16x32xf32> -> vector<16x32xf32>
    %c1 = arith.constant 1 : index
    %c0_51 = arith.constant 0 : index
    %61 = vector.load %arg8[%c1, %c0_51] : memref<8x128xf32, #tpu.memory_space<vmem>>, vector<1x32xf32>
    %62 = vector.broadcast %61 : vector<1x32xf32> to vector<16x32xf32>
    %63 = arith.addf %60, %62 : vector<16x32xf32>
    %64 = vector.broadcast %1 : vector<16x1xf32> to vector<16x32xf32>
    %65 = arith.mulf %63, %64 : vector<16x32xf32>
    %66 = arith.addf %65, %0 : vector<16x32xf32>
    %cst_52 = arith.constant dense<0.000000e+00> : vector<16xf32>
    %67 = vector.multi_reduction <add>, %66, %cst_52 [1] : vector<16x32xf32> to vector<16xf32>
    %68 = vector.shape_cast %67 : vector<16xf32> to vector<16x1xf32>
    %cst_53 = arith.constant 3.200000e+01 : f32
    %69 = vector.broadcast %cst_53 : f32 to vector<16x1xf32>
    %70 = arith.divf %68, %69 : vector<16x1xf32>
    %71 = vector.broadcast %70 : vector<16x1xf32> to vector<16x32xf32>
    %72 = arith.subf %66, %71 : vector<16x32xf32>
    %73 = arith.mulf %72, %72 : vector<16x32xf32>
    %cst_54 = arith.constant dense<0.000000e+00> : vector<16xf32>
    %74 = vector.multi_reduction <add>, %73, %cst_54 [1] : vector<16x32xf32> to vector<16xf32>
    %75 = vector.shape_cast %74 : vector<16xf32> to vector<16x1xf32>
    %cst_55 = arith.constant 3.200000e+01 : f32
    %76 = vector.broadcast %cst_55 : f32 to vector<16x1xf32>
    %77 = arith.divf %75, %76 : vector<16x1xf32>
    %78 = vector.broadcast %70 : vector<16x1xf32> to vector<16x32xf32>
    %79 = arith.subf %66, %78 : vector<16x32xf32>
    %cst_56 = arith.constant 9.99999997E-7 : f32
    %80 = vector.broadcast %cst_56 : f32 to vector<16x1xf32>
    %81 = arith.addf %77, %80 : vector<16x1xf32>
    %82 = math.rsqrt %81 : vector<16x1xf32>
    %83 = vector.broadcast %82 : vector<16x1xf32> to vector<16x32xf32>
    %84 = arith.mulf %79, %83 : vector<16x32xf32>
    %c4 = arith.constant 4 : index
    %c0_57 = arith.constant 0 : index
    %85 = vector.load %arg8[%c4, %c0_57] : memref<8x128xf32, #tpu.memory_space<vmem>>, vector<1x32xf32>
    %86 = vector.broadcast %85 : vector<1x32xf32> to vector<16x32xf32>
    %87 = arith.mulf %84, %86 : vector<16x32xf32>
    %c5 = arith.constant 5 : index
    %c0_58 = arith.constant 0 : index
    %88 = vector.load %arg8[%c5, %c0_58] : memref<8x128xf32, #tpu.memory_space<vmem>>, vector<1x32xf32>
    %89 = vector.broadcast %88 : vector<1x32xf32> to vector<16x32xf32>
    %90 = arith.addf %87, %89 : vector<16x32xf32>
    %c0_59 = arith.constant 0 : index
    %c0_60 = arith.constant 0 : index
    %91 = vector.load %arg6[%c0_59, %c0_60] : memref<32x64xf32, #tpu.memory_space<vmem>>, vector<32x64xf32>
    %cst_61 = arith.constant dense<0.000000e+00> : vector<16x64xf32>
    %92 = tpu.matmul %90, %91, %cst_61 {dimension_numbers = #tpu.dot_dimension_numbers<[1], [0], [0], [1], [0, 0, 1, 1], [], []>} : vector<16x32xf32>, vector<32x64xf32>, vector<16x64xf32> -> vector<16x64xf32>
    %c2 = arith.constant 2 : index
    %c0_62 = arith.constant 0 : index
    %93 = vector.load %arg8[%c2, %c0_62] : memref<8x128xf32, #tpu.memory_space<vmem>>, vector<1x64xf32>
    %94 = vector.broadcast %93 : vector<1x64xf32> to vector<16x64xf32>
    %95 = arith.addf %92, %94 : vector<16x64xf32>
    %cst_63 = arith.constant 0.000000e+00 : f32
    %96 = vector.broadcast %cst_63 : f32 to vector<16x64xf32>
    %97 = arith.maximumf %95, %96 : vector<16x64xf32>
    %c0_64 = arith.constant 0 : index
    %c0_65 = arith.constant 0 : index
    %98 = vector.load %arg7[%c0_64, %c0_65] : memref<64x32xf32, #tpu.memory_space<vmem>>, vector<64x32xf32>
    %cst_66 = arith.constant dense<0.000000e+00> : vector<16x32xf32>
    %99 = tpu.matmul %97, %98, %cst_66 {dimension_numbers = #tpu.dot_dimension_numbers<[1], [0], [0], [1], [0, 0, 1, 1], [], []>} : vector<16x64xf32>, vector<64x32xf32>, vector<16x32xf32> -> vector<16x32xf32>
    %c3 = arith.constant 3 : index
    %c0_67 = arith.constant 0 : index
    %100 = vector.load %arg8[%c3, %c0_67] : memref<8x128xf32, #tpu.memory_space<vmem>>, vector<1x32xf32>
    %101 = vector.broadcast %100 : vector<1x32xf32> to vector<16x32xf32>
    %102 = arith.addf %99, %101 : vector<16x32xf32>
    %103 = vector.broadcast %1 : vector<16x1xf32> to vector<16x32xf32>
    %104 = arith.mulf %102, %103 : vector<16x32xf32>
    %105 = arith.addf %104, %90 : vector<16x32xf32>
    %cst_68 = arith.constant dense<0.000000e+00> : vector<16xf32>
    %106 = vector.multi_reduction <add>, %105, %cst_68 [1] : vector<16x32xf32> to vector<16xf32>
    %107 = vector.shape_cast %106 : vector<16xf32> to vector<16x1xf32>
    %cst_69 = arith.constant 3.200000e+01 : f32
    %108 = vector.broadcast %cst_69 : f32 to vector<16x1xf32>
    %109 = arith.divf %107, %108 : vector<16x1xf32>
    %110 = vector.broadcast %109 : vector<16x1xf32> to vector<16x32xf32>
    %111 = arith.subf %105, %110 : vector<16x32xf32>
    %112 = arith.mulf %111, %111 : vector<16x32xf32>
    %cst_70 = arith.constant dense<0.000000e+00> : vector<16xf32>
    %113 = vector.multi_reduction <add>, %112, %cst_70 [1] : vector<16x32xf32> to vector<16xf32>
    %114 = vector.shape_cast %113 : vector<16xf32> to vector<16x1xf32>
    %cst_71 = arith.constant 3.200000e+01 : f32
    %115 = vector.broadcast %cst_71 : f32 to vector<16x1xf32>
    %116 = arith.divf %114, %115 : vector<16x1xf32>
    %117 = vector.broadcast %109 : vector<16x1xf32> to vector<16x32xf32>
    %118 = arith.subf %105, %117 : vector<16x32xf32>
    %cst_72 = arith.constant 9.99999997E-7 : f32
    %119 = vector.broadcast %cst_72 : f32 to vector<16x1xf32>
    %120 = arith.addf %116, %119 : vector<16x1xf32>
    %121 = math.rsqrt %120 : vector<16x1xf32>
    %122 = vector.broadcast %121 : vector<16x1xf32> to vector<16x32xf32>
    %123 = arith.mulf %118, %122 : vector<16x32xf32>
    %c6 = arith.constant 6 : index
    %c0_73 = arith.constant 0 : index
    %124 = vector.load %arg8[%c6, %c0_73] : memref<8x128xf32, #tpu.memory_space<vmem>>, vector<1x32xf32>
    %125 = vector.broadcast %124 : vector<1x32xf32> to vector<16x32xf32>
    %126 = arith.mulf %123, %125 : vector<16x32xf32>
    %c7 = arith.constant 7 : index
    %c0_74 = arith.constant 0 : index
    %127 = vector.load %arg8[%c7, %c0_74] : memref<8x128xf32, #tpu.memory_space<vmem>>, vector<1x32xf32>
    %128 = vector.broadcast %127 : vector<1x32xf32> to vector<16x32xf32>
    %129 = arith.addf %126, %128 : vector<16x32xf32>
    %c0_75 = arith.constant 0 : index
    %c0_76 = arith.constant 0 : index
    %130 = vector.load %arg9[%c0_75, %c0_76] : memref<16x32xf32, #tpu.memory_space<vmem>>, vector<16x32xf32>
    tpu.vector_store %arg9[%c0_75, %c0_76], %129 {strides = array<i32>} : memref<16x32xf32, #tpu.memory_space<vmem>>, vector<16x32xf32>,
    return
  }
  func.func @transform_0(%arg0: i32) -> (i32, i32) {
    %c0_i32 = arith.constant 0 : i32
    %c0_i32_0 = arith.constant 0 : i32
    %c0_i32_1 = arith.constant 0 : i32
    return %c0_i32, %c0_i32_0 : i32, i32
  }
  func.func @transform_1(%arg0: i32) -> (i32, i32) {
    %c0_i32 = arith.constant 0 : i32
    %c0_i32_0 = arith.constant 0 : i32
    %c0_i32_1 = arith.constant 0 : i32
    return %c0_i32, %c0_i32_0 : i32, i32
  }
  func.func @transform_2(%arg0: i32) -> (i32, i32) {
    %c0_i32 = arith.constant 0 : i32
    %c0_i32_0 = arith.constant 0 : i32
    %c0_i32_1 = arith.constant 0 : i32
    return %c0_i32, %c0_i32_0 : i32, i32
  }
  func.func @transform_3(%arg0: i32) -> (i32, i32) {
    %c0_i32 = arith.constant 0 : i32
    %c0_i32_0 = arith.constant 0 : i32
    %c0_i32_1 = arith.constant 0 : i32
    return %c0_i32, %c0_i32_0 : i32, i32
  }
  func.func @transform_4(%arg0: i32) -> (i32, i32) {
    %c0_i32 = arith.constant 0 : i32
    %c0_i32_0 = arith.constant 0 : i32
    %c0_i32_1 = arith.constant 0 : i32
    return %c0_i32, %c0_i32_0 : i32, i32
  }
  func.func @transform_5(%arg0: i32) -> (i32, i32) {
    %c0_i32 = arith.constant 0 : i32
    %c0_i32_0 = arith.constant 0 : i32
    %c0_i32_1 = arith.constant 0 : i32
    return %c0_i32, %c0_i32_0 : i32, i32
  }
  func.func @transform_6(%arg0: i32) -> (i32, i32) {
    %c0_i32 = arith.constant 0 : i32
    %c0_i32_0 = arith.constant 0 : i32
    %c0_i32_1 = arith.constant 0 : i32
    return %c0_i32, %c0_i32_0 : i32, i32
  }
  func.func @transform_7(%arg0: i32) -> (i32, i32) {
    %c0_i32 = arith.constant 0 : i32
    %c0_i32_0 = arith.constant 0 : i32
    %c0_i32_1 = arith.constant 0 : i32
    return %c0_i32, %c0_i32_0 : i32, i32
  }
  func.func @transform_8(%arg0: i32) -> (i32, i32) {
    %c0_i32 = arith.constant 0 : i32
    %c0_i32_0 = arith.constant 0 : i32
    %c0_i32_1 = arith.constant 0 : i32
    return %c0_i32, %c0_i32_0 : i32, i32
  }
}

</mosaic_0001>

<llo_original>
// kernel: tpu_custom_call.1
$region0: #{tpu_custom_call.1}
  #allocation0 [shape = 'u32[]', space=smem, size = 0x4, offset = 0x4, fixed_abs, tag = 'smem constant byte address 0x4 - core index']
  #allocation1 [shape = 'u32[144,128]{1,0:T(1,128)}', space=vmem, size = 0x12000, scoped, tag = 'internal scratch']
  #allocation2 [shape = 'f32[64,8]{1,0:T(8,128)}', space=vmem, size = 0x8000, scoped, tag = 'scratch operand']
  #allocation3 [shape = 'f32[64,8]{1,0:T(8,128)}', space=vmem, size = 0x8000, scoped, tag = 'scratch operand']
  #allocation4 [shape = 'f32[64,8]{1,0:T(8,128)}', space=vmem, size = 0x8000, scoped, tag = 'scratch operand']
  #allocation5 [shape = 'f32[16,32]{1,0:T(8,128)}', space=vmem, size = 0x2000, scoped, tag = 'scratch operand']
  %s0 = inlined_call_operand.hbm [shape: f32[16,32], index: 0, kind: input, shape index: {}]
  %s1 = inlined_call_operand.vmem [shape: f32[16,1], index: 1, kind: input, shape index: {}]
  %s2 = inlined_call_operand.vmem [shape: f32[64,64], index: 2, kind: input, shape index: {}]
  %s3 = inlined_call_operand.vmem [shape: f32[32,96], index: 3, kind: input, shape index: {}]
  %s4 = inlined_call_operand.hbm [shape: f32[32,32], index: 4, kind: input, shape index: {}]
  %s5 = inlined_call_operand.hbm [shape: f32[32,64], index: 5, kind: input, shape index: {}]
  %s6 = inlined_call_operand.vmem [shape: f32[64,32], index: 6, kind: input, shape index: {}]
  %s7 = inlined_call_operand.vmem [shape: f32[8,128], index: 7, kind: input, shape index: {}]
  %s8 = inlined_call_operand.hbm [shape: f32[16,32], index: 8, kind: output, shape index: {}]
  %s9 = sld [smem:[#allocation0]]
  $region54: #{tpu_custom_call.1} parent=0
    _
  %s11 = ssub.s32 1, %s9
  %s12 = scalar_select 0, %s11, %s9
  $region1: #{tpu_custom_call.1} parent=0
    #allocation6 [shape = 'u8[8192]{0}', space=vmem, size = 0x2000, scoped, tag = 'input window, operand 0, single buffered']
    #allocation7 [shape = 's32[1]{0}', space=sflag, size = 0x4, scoped, tag = 'scoped memory for tpu_custom_call.1']
    #allocation8 [shape = 's32[1]{0}', space=sflag, size = 0x4, scoped, tag = 'scoped memory for tpu_custom_call.1']
    #allocation9 [shape = 'u8[16384]{0}', space=vmem, size = 0x4000, scoped, tag = 'input window, operand 4, single buffered']
    #allocation10 [shape = 's32[1]{0}', space=sflag, size = 0x4, scoped, tag = 'scoped memory for tpu_custom_call.1']
    #allocation11 [shape = 'u8[16384]{0}', space=vmem, size = 0x4000, scoped, tag = 'input window, operand 5, single buffered']
    #allocation12 [shape = 'u8[8192]{0}', space=vmem, size = 0x2000, scoped, tag = 'output window, operand 0, single buffered']
    %13 = vsyncpa [#allocation7], 0
    %14 = vsyncpa [#allocation10], 0
    %15 = vsyncpa [#allocation8], 0
    // Predicated region
    $region2: #{tpu_custom_call.1} parent=1 // pred_check
      _
    $region3: #{tpu_custom_call.1} parent=1 // pred_check_branch
      %17 = sbr.rel (0) target = $region5
    $region4: #{tpu_custom_call.1} parent=1 // pred_region
      %s19 = ssub.s32 256, 256
      %20 = vsyncadd [#allocation7], %s19
      %s21 = sshll.u32 [#allocation6], 4
      %s22 = int_to_ptr.vmem [resolvable:$true] %s21
      %27 = dma.hbm_to_vmem [thread:$0]  %s0, 256, %s22, [#allocation7], 128, 128, 8
    $region5: #{tpu_custom_call.1} parent=1 // pred_fallthru
      _
    // Predicated region
    $region6: #{tpu_custom_call.1} parent=1 // pred_check
      _
    $region7: #{tpu_custom_call.1} parent=1 // pred_check_branch
      %29 = sbr.rel (0) target = $region9
    $region8: #{tpu_custom_call.1} parent=1 // pred_region
      _
    $region9: #{tpu_custom_call.1} parent=1 // pred_fallthru
      _
    // Predicated region
    $region10: #{tpu_custom_call.1} parent=1 // pred_check
      _
    $region11: #{tpu_custom_call.1} parent=1 // pred_check_branch
      %31 = sbr.rel (0) target = $region13
    $region12: #{tpu_custom_call.1} parent=1 // pred_region
      _
    $region13: #{tpu_custom_call.1} parent=1 // pred_fallthru
      _
    // Predicated region
    $region14: #{tpu_custom_call.1} parent=1 // pred_check
      _
    $region15: #{tpu_custom_call.1} parent=1 // pred_check_branch
      %33 = sbr.rel (0) target = $region17
    $region16: #{tpu_custom_call.1} parent=1 // pred_region
      _
    $region17: #{tpu_custom_call.1} parent=1 // pred_fallthru
      _
    // Predicated region
    $region18: #{tpu_custom_call.1} parent=1 // pred_check
      _
    $region19: #{tpu_custom_call.1} parent=1 // pred_check_branch
      %35 = sbr.rel (0) target = $region21
    $region20: #{tpu_custom_call.1} parent=1 // pred_region
      %s37 = ssub.s32 512, 512
      %38 = vsyncadd [#allocation10], %s37
      %s39 = sshll.u32 [#allocation9], 4
      %s40 = int_to_ptr.vmem [resolvable:$true] %s39
      %45 = dma.hbm_to_vmem [thread:$0]  %s4, 512, %s40, [#allocation10], 128, 128, 8
    $region21: #{tpu_custom_call.1} parent=1 // pred_fallthru
      _
    // Predicated region
    $region22: #{tpu_custom_call.1} parent=1 // pred_check
      _
    $region23: #{tpu_custom_call.1} parent=1 // pred_check_branch
      %47 = sbr.rel (0) target = $region25
    $region24: #{tpu_custom_call.1} parent=1 // pred_region
      %s49 = ssub.s32 512, 512
      %50 = vsyncadd [#allocation10], %s49
      %s51 = sshll.u32 [#allocation11], 4
      %s52 = int_to_ptr.vmem [resolvable:$true] %s51
      %57 = dma.hbm_to_vmem [thread:$0]  %s5, 512, %s52, [#allocation10], 128, 128, 8
    $region25: #{tpu_custom_call.1} parent=1 // pred_fallthru
      _
    // Predicated region
    $region26: #{tpu_custom_call.1} parent=1 // pred_check
      _
    $region27: #{tpu_custom_call.1} parent=1 // pred_check_branch
      %59 = sbr.rel (0) target = $region29
    $region28: #{tpu_custom_call.1} parent=1 // pred_region
      _
    $region29: #{tpu_custom_call.1} parent=1 // pred_fallthru
      _
    // Predicated region
    $region30: #{tpu_custom_call.1} parent=1 // pred_check
      _
    $region31: #{tpu_custom_call.1} parent=1 // pred_check_branch
      %61 = sbr.rel (0) target = $region33
    $region32: #{tpu_custom_call.1} parent=1 // pred_region
      _
    $region33: #{tpu_custom_call.1} parent=1 // pred_fallthru
      _
    // Predicated region
    $region34: #{tpu_custom_call.1} parent=1 // pred_check
      _
    $region35: #{tpu_custom_call.1} parent=1 // pred_check_branch
      %63 = sbr.rel (0) target = $region37
    $region36: #{tpu_custom_call.1} parent=1 // pred_region
      %64 = dma.done [#allocation7], 256
    $region37: #{tpu_custom_call.1} parent=1 // pred_fallthru
      _
    // Predicated region
    $region38: #{tpu_custom_call.1} parent=1 // pred_check
      _
    $region39: #{tpu_custom_call.1} parent=1 // pred_check_branch
      %66 = sbr.rel (0) target = $region41
    $region40: #{tpu_custom_call.1} parent=1 // pred_region
      %67 = dma.done [#allocation10], 512
    $region41: #{tpu_custom_call.1} parent=1 // pred_fallthru
      _
    // Predicated region
    $region42: #{tpu_custom_call.1} parent=1 // pred_check
      _
    $region43: #{tpu_custom_call.1} parent=1 // pred_check_branch
      %69 = sbr.rel (0) target = $region45
    $region44: #{tpu_custom_call.1} parent=1 // pred_region
      %70 = dma.done [#allocation10], 512
    $region45: #{tpu_custom_call.1} parent=1 // pred_fallthru
      _
    %v71 = vld [vmem:[#allocation6] sm:$0xff]
    %v72 = vld [vmem:[#allocation6 + $0x8] sm:$0xff]
    %v73 = vld [vmem:[%s1] sm:$0xff]
    %v74 = vld [vmem:[%s1 + $0x8] sm:$0xff]
    %v75 = vld [vmem:[%s3] sm:$0xff]
    %v76 = vld [vmem:[%s3 + $0x8] sm:$0xff]
    %v77 = vld [vmem:[%s3 + $0x10] sm:$0xff]
    %v78 = vld [vmem:[%s3 + $0x18] sm:$0xff]
    %v79 = vld [vmem:[%s7] sm:$0x1]
    %v80 = vlaneseq
    %v81 = vshrl.u32 %v80, 7
    %v82 = vsub.s32 0, %v81
    %v83 = vrot.slane %v79, %v82
    %vm84 = vcmask 261120
    %v86 = vsel %vm84, %v71, 0
    %v89 = vsel %vm84, %v72, 0
    %91 = vmatprep.subr.mxu0 0.0
    %92 = vmatpush1.msra.mxu0 %v75
    %93 = vmatprep.subr.mxu0 0.0
    %94 = vmatpush1.msra.mxu0 %v76
    %95 = vmatprep.subr.mxu0 0.0
    %96 = vmatpush1.msra.mxu0 %v77
    %97 = vmatprep.subr.mxu0 0.0
    %98 = vmatpush1.msra.mxu0 %v78
    %99 = vmatprep.subr.mxu0 0.0
    %100 = vmatpush1.msra.mxu0 0.0
    %101 = vmatprep.subr.mxu0 0.0
    %102 = vmatpush1.msra.mxu0 0.0
    %103 = vmatprep.subr.mxu0 0.0
    %104 = vmatpush1.msra.mxu0 0.0
    %105 = vmatprep.subr.mxu0 0.0
    %106 = vmatpush1.msra.mxu0 0.0
    %107 = vmatprep.subr.mxu0 0.0
    %108 = vmatpush1.msra.mxu0 0.0
    %109 = vmatprep.subr.mxu0 0.0
    %110 = vmatpush1.msra.mxu0 0.0
    %111 = vmatprep.subr.mxu0 0.0
    %112 = vmatpush1.msra.mxu0 0.0
    %113 = vmatprep.subr.mxu0 0.0
    %114 = vmatpush1.msra.mxu0 0.0
    %115 = vmatprep.subr.mxu0 0.0
    %116 = vmatpush1.msra.mxu0 0.0
    %117 = vmatprep.subr.mxu0 0.0
    %118 = vmatpush1.msra.mxu0 0.0
    %119 = vmatprep.subr.mxu0 0.0
    %120 = vmatpush1.msra.mxu0 0.0
    %121 = vmatprep.subr.mxu0 0.0
    %122 = vmatpush1.msra.mxu0 0.0
    %123 = vmatprep.subr.mxu0 0.0
    %124 = vmatpush1.msra.mxu0 0.0
    %125 = vmatprep.subr.mxu0 0.0
    %126 = vmatpush1.msra.mxu0 0.0
    %127 = vmatprep.subr.mxu0 0.0
    %128 = vmatpush1.msra.mxu0 0.0
    %129 = vmatprep.subr.mxu0 0.0
    %130 = vmatpush1.msra.mxu0 0.0
    %131 = vmatprep.subr.mxu0 0.0
    %132 = vmatpush1.msra.mxu0 0.0
    %133 = vmatprep.subr.mxu0 0.0
    %134 = vmatpush1.msra.mxu0 0.0
    %135 = vmatprep.subr.mxu0 0.0
    %136 = vmatpush1.msra.mxu0 0.0
    %137 = vmatprep.subr.mxu0 0.0
    %138 = vmatpush1.msra.mxu0 0.0
    %139 = vmatprep.subr.mxu0 0.0
    %140 = vmatpush1.msra.mxu0 0.0
    %141 = vmatprep.subr.mxu0 0.0
    %142 = vmatpush1.msra.mxu0 0.0
    %143 = vmatprep.subr.mxu0 0.0
    %144 = vmatpush1.msra.mxu0 0.0
    %145 = vmatprep.subr.mxu0 0.0
    %146 = vmatpush1.msra.mxu0 0.0
    %147 = vmatprep.subr.mxu0 0.0
    %148 = vmatpush1.msra.mxu0 0.0
    %149 = vmatprep.subr.mxu0 0.0
    %150 = vmatpush1.msra.mxu0 0.0
    %151 = vmatprep.subr.mxu0 0.0
    %152 = vmatpush1.msra.mxu0 0.0
    %153 = vmatprep.subr.mxu0 0.0
    %154 = vmatpush1.msra.mxu0 0.0
    %155 = vmatprep.mubr.f32.mxu0 0.0
    %156 = vmatmul.mubr.f32.gmra.mrb[0].mxu0 %v86
    %v157 = vpop.f32.mrb[0].mxu0
    %v158 = vadd.f32 %v83, %v157
    %v159 = vpop.f32.mrb[0].mxu0
    %160 = vmatprep.mubr.f32.mxu0 0.0
    %161 = vmatmul.mubr.f32.gmra.mrb[0].mxu0 %v89
    %v162 = vpop.f32.mrb[0].mxu0
    %v163 = vadd.f32 %v83, %v162
    %v164 = vpop.f32.mrb[0].mxu0
    %165 = vdwg.mxu0
    %167 = vset.pattern.permute.xlu0 0
    %168 = vperm.xlu0 %167, %v73
    %v169 = vpop.permute.xlu0 %168
    %172 = vset.pattern.permute.xlu0 0
    %173 = vperm.xlu0 %172, %v74
    %v174 = vpop.permute.xlu0 %173
    %v176 = vmul.f32 %v158, %v169
    %v177 = vmul.f32 %v163, %v174
    %vm178 = vcmask 64512
    %179 = vst.msk [vmem:[#allocation2] sm:$0xff] %vm178, %v176
    %180 = vst.msk [vmem:[#allocation2 + $0x8] sm:$0xff] %vm178, %v177
    %183 = vrot.lane.b32.xlu0 %v176, 96
    %v184 = vpop.permute.xlu0 %183
    %185 = vrot.lane.b32.xlu0 %v177, 96
    %v186 = vpop.permute.xlu0 %185
    %189 = vst.msk [vmem:[#allocation3] sm:$0xff] %vm178, %v184
    %190 = vst.msk [vmem:[#allocation3 + $0x8] sm:$0xff] %vm178, %v186
    %191 = vrot.lane.b32.xlu0 %v176, 64
    %v192 = vpop.permute.xlu0 %191
    %193 = vrot.lane.b32.xlu0 %v177, 64
    %v194 = vpop.permute.xlu0 %193
    %197 = vst.msk [vmem:[#allocation4] sm:$0xff] %vm178, %v192
    %198 = vst.msk [vmem:[#allocation4 + $0x8] sm:$0xff] %vm178, %v194
    %199 = vrot.lane.b32.xlu0 %v176, 120
    %v200 = vpop.permute.xlu0 %199
    %201 = vrot.lane.b32.xlu0 %v177, 120
    %v202 = vpop.permute.xlu0 %201
    %205 = vst.msk [vmem:[#allocation2 + $0x10] sm:$0xff] %vm178, %v200
    %206 = vst.msk [vmem:[#allocation2 + $0x18] sm:$0xff] %vm178, %v202
    %207 = vrot.lane.b32.xlu0 %v176, 88
    %v208 = vpop.permute.xlu0 %207
    %209 = vrot.lane.b32.xlu0 %v177, 88
    %v210 = vpop.permute.xlu0 %209
    %213 = vst.msk [vmem:[#allocation3 + $0x10] sm:$0xff] %vm178, %v208
    %214 = vst.msk [vmem:[#allocation3 + $0x18] sm:$0xff] %vm178, %v210
    %215 = vrot.lane.b32.xlu0 %v176, 56
    %v216 = vpop.permute.xlu0 %215
    %217 = vrot.lane.b32.xlu0 %v177, 56
    %v218 = vpop.permute.xlu0 %217
    %221 = vst.msk [vmem:[#allocation4 + $0x10] sm:$0xff] %vm178, %v216
    %222 = vst.msk [vmem:[#allocation4 + $0x18] sm:$0xff] %vm178, %v218
    %223 = vrot.lane.b32.xlu0 %v176, 112
    %v224 = vpop.permute.xlu0 %223
    %225 = vrot.lane.b32.xlu0 %v177, 112
    %v226 = vpop.permute.xlu0 %225
    %229 = vst.msk [vmem:[#allocation2 + $0x20] sm:$0xff] %vm178, %v224
    %230 = vst.msk [vmem:[#allocation2 + $0x28] sm:$0xff] %vm178, %v226
    %231 = vrot.lane.b32.xlu0 %v176, 80
    %v232 = vpop.permute.xlu0 %231
    %233 = vrot.lane.b32.xlu0 %v177, 80
    %v234 = vpop.permute.xlu0 %233
    %237 = vst.msk [vmem:[#allocation3 + $0x20] sm:$0xff] %vm178, %v232
    %238 = vst.msk [vmem:[#allocation3 + $0x28] sm:$0xff] %vm178, %v234
    %239 = vrot.lane.b32.xlu0 %v176, 48
    %v240 = vpop.permute.xlu0 %239
    %241 = vrot.lane.b32.xlu0 %v177, 48
    %v242 = vpop.permute.xlu0 %241
    %245 = vst.msk [vmem:[#allocation4 + $0x20] sm:$0xff] %vm178, %v240
    %246 = vst.msk [vmem:[#allocation4 + $0x28] sm:$0xff] %vm178, %v242
    %247 = vrot.lane.b32.xlu0 %v176, 104
    %v248 = vpop.permute.xlu0 %247
    %249 = vrot.lane.b32.xlu0 %v177, 104
    %v250 = vpop.permute.xlu0 %249
    %253 = vst.msk [vmem:[#allocation2 + $0x30] sm:$0xff] %vm178, %v248
    %254 = vst.msk [vmem:[#allocation2 + $0x38] sm:$0xff] %vm178, %v250
    %255 = vrot.lane.b32.xlu0 %v176, 72
    %v256 = vpop.permute.xlu0 %255
    %257 = vrot.lane.b32.xlu0 %v177, 72
    %v258 = vpop.permute.xlu0 %257
    %261 = vst.msk [vmem:[#allocation3 + $0x30] sm:$0xff] %vm178, %v256
    %262 = vst.msk [vmem:[#allocation3 + $0x38] sm:$0xff] %vm178, %v258
    %263 = vrot.lane.b32.xlu0 %v176, 40
    %v264 = vpop.permute.xlu0 %263
    %265 = vrot.lane.b32.xlu0 %v177, 40
    %v266 = vpop.permute.xlu0 %265
    %269 = vst.msk [vmem:[#allocation4 + $0x30] sm:$0xff] %vm178, %v264
    %270 = vst.msk [vmem:[#allocation4 + $0x38] sm:$0xff] %vm178, %v266
    %v271 = vld [vmem:[#allocation2] sm:$0xff]
    %v272 = vld [vmem:[#allocation2 + $0x8] sm:$0xff]
    %v273 = vld [vmem:[#allocation2 + $0x10] sm:$0xff]
    %v274 = vld [vmem:[#allocation2 + $0x18] sm:$0xff]
    %v275 = vld [vmem:[#allocation2 + $0x20] sm:$0xff]
    %v276 = vld [vmem:[#allocation2 + $0x28] sm:$0xff]
    %v277 = vld [vmem:[#allocation2 + $0x30] sm:$0xff]
    %v278 = vld [vmem:[#allocation2 + $0x38] sm:$0xff]
    %v279 = vld [vmem:[#allocation3] sm:$0xff]
    %v280 = vld [vmem:[#allocation3 + $0x8] sm:$0xff]
    %v281 = vld [vmem:[#allocation3 + $0x10] sm:$0xff]
    %v282 = vld [vmem:[#allocation3 + $0x18] sm:$0xff]
    %v283 = vld [vmem:[#allocation3 + $0x20] sm:$0xff]
    %v284 = vld [vmem:[#allocation3 + $0x28] sm:$0xff]
    %v285 = vld [vmem:[#allocation3 + $0x30] sm:$0xff]
    %v286 = vld [vmem:[#allocation3 + $0x38] sm:$0xff]
    %v287 = vld [vmem:[#allocation4] sm:$0xff]
    %v288 = vld [vmem:[#allocation4 + $0x8] sm:$0xff]
    %v289 = vld [vmem:[#allocation4 + $0x10] sm:$0xff]
    %v290 = vld [vmem:[#allocation4 + $0x18] sm:$0xff]
    %v291 = vld [vmem:[#allocation4 + $0x20] sm:$0xff]
    %v292 = vld [vmem:[#allocation4 + $0x28] sm:$0xff]
    %v293 = vld [vmem:[#allocation4 + $0x30] sm:$0xff]
    %v294 = vld [vmem:[#allocation4 + $0x38] sm:$0xff]
    %v295 = vld [vmem:[%s2] sm:$0xff]
    %v296 = vld [vmem:[%s2 + $0x8] sm:$0xff]
    %v297 = vld [vmem:[%s2 + $0x10] sm:$0xff]
    %v298 = vld [vmem:[%s2 + $0x18] sm:$0xff]
    %v299 = vld [vmem:[%s2 + $0x20] sm:$0xff]
    %v300 = vld [vmem:[%s2 + $0x28] sm:$0xff]
    %v301 = vld [vmem:[%s2 + $0x30] sm:$0xff]
    %v302 = vld [vmem:[%s2 + $0x38] sm:$0xff]
    %v304 = vsel %vm178, %v271, 0
    %v307 = vsel %vm178, %v272, 0
    %v310 = vsel %vm178, %v273, 0
    %v313 = vsel %vm178, %v274, 0
    %v316 = vsel %vm178, %v275, 0
    %v319 = vsel %vm178, %v276, 0
    %v322 = vsel %vm178, %v277, 0
    %v325 = vsel %vm178, %v278, 0
    %v328 = vsel %vm178, %v279, 0
    %v331 = vsel %vm178, %v280, 0
    %v334 = vsel %vm178, %v281, 0
    %v337 = vsel %vm178, %v282, 0
    %v340 = vsel %vm178, %v283, 0
    %v343 = vsel %vm178, %v284, 0
    %v346 = vsel %vm178, %v285, 0
    %v349 = vsel %vm178, %v286, 0
    %351 = vmatprep.subr.mxu0 0.0
    %352 = vmatpush1.xpose.msra.mxu0 %v328
    %353 = vmatprep.subr.mxu0 0.0
    %354 = vmatpush1.xpose.msra.mxu0 %v331
    %355 = vmatprep.subr.mxu0 0.0
    %356 = vmatpush1.xpose.msra.mxu0 %v334
    %357 = vmatprep.subr.mxu0 0.0
    %358 = vmatpush1.xpose.msra.mxu0 %v337
    %359 = vmatprep.subr.mxu0 0.0
    %360 = vmatpush1.xpose.msra.mxu0 %v340
    %361 = vmatprep.subr.mxu0 0.0
    %362 = vmatpush1.xpose.msra.mxu0 %v343
    %363 = vmatprep.subr.mxu0 0.0
    %364 = vmatpush1.xpose.msra.mxu0 %v346
    %365 = vmatprep.subr.mxu0 0.0
    %366 = vmatpush1.xpose.msra.mxu0 %v349
    %367 = vmatprep.subr.mxu0 0.0
    %368 = vmatpush1.xpose.msra.mxu0 0.0
    %369 = vmatprep.subr.mxu0 0.0
    %370 = vmatpush1.xpose.msra.mxu0 0.0
    %371 = vmatprep.subr.mxu0 0.0
    %372 = vmatpush1.xpose.msra.mxu0 0.0
    %373 = vmatprep.subr.mxu0 0.0
    %374 = vmatpush1.xpose.msra.mxu0 0.0
    %375 = vmatprep.subr.mxu0 0.0
    %376 = vmatpush1.xpose.msra.mxu0 0.0
    %377 = vmatprep.subr.mxu0 0.0
    %378 = vmatpush1.xpose.msra.mxu0 0.0
    %379 = vmatprep.subr.mxu0 0.0
    %380 = vmatpush1.xpose.msra.mxu0 0.0
    %381 = vmatprep.subr.mxu0 0.0
    %382 = vmatpush1.xpose.msra.mxu0 0.0
    %383 = vmatprep.subr.mxu0 0.0
    %384 = vmatpush1.xpose.msra.mxu0 0.0
    %385 = vmatprep.subr.mxu0 0.0
    %386 = vmatpush1.xpose.msra.mxu0 0.0
    %387 = vmatprep.subr.mxu0 0.0
    %388 = vmatpush1.xpose.msra.mxu0 0.0
    %389 = vmatprep.subr.mxu0 0.0
    %390 = vmatpush1.xpose.msra.mxu0 0.0
    %391 = vmatprep.subr.mxu0 0.0
    %392 = vmatpush1.xpose.msra.mxu0 0.0
    %393 = vmatprep.subr.mxu0 0.0
    %394 = vmatpush1.xpose.msra.mxu0 0.0
    %395 = vmatprep.subr.mxu0 0.0
    %396 = vmatpush1.xpose.msra.mxu0 0.0
    %397 = vmatprep.subr.mxu0 0.0
    %398 = vmatpush1.xpose.msra.mxu0 0.0
    %399 = vmatprep.subr.mxu0 0.0
    %400 = vmatpush1.xpose.msra.mxu0 0.0
    %401 = vmatprep.subr.mxu0 0.0
    %402 = vmatpush1.xpose.msra.mxu0 0.0
    %403 = vmatprep.subr.mxu0 0.0
    %404 = vmatpush1.xpose.msra.mxu0 0.0
    %405 = vmatprep.subr.mxu0 0.0
    %406 = vmatpush1.xpose.msra.mxu0 0.0
    %407 = vmatprep.subr.mxu0 0.0
    %408 = vmatpush1.xpose.msra.mxu0 0.0
    %409 = vmatprep.subr.mxu0 0.0
    %410 = vmatpush1.xpose.msra.mxu0 0.0
    %411 = vmatprep.subr.mxu0 0.0
    %412 = vmatpush1.xpose.msra.mxu0 0.0
    %413 = vmatprep.subr.mxu0 0.0
    %414 = vmatpush1.xpose.msra.mxu0 0.0
    %415 = vmatprep.mubr.f32.mxu0 0.0
    %416 = vmatmul.mubr.f32.gmra.mrb[0].mxu0 %v304
    %v417 = vpop.f32.mrb[0].mxu0
    %v418 = vadd.f32 %v295, %v417
    %v419 = vpop.f32.mrb[0].mxu0
    %420 = vmatprep.mubr.f32.mxu0 0.0
    %421 = vmatmul.mubr.f32.gmra.mrb[0].mxu0 %v307
    %v422 = vpop.f32.mrb[0].mxu0
    %v423 = vadd.f32 %v296, %v422
    %v424 = vpop.f32.mrb[0].mxu0
    %425 = vmatprep.mubr.f32.mxu0 0.0
    %426 = vmatmul.mubr.f32.gmra.mrb[0].mxu0 %v310
    %v427 = vpop.f32.mrb[0].mxu0
    %v428 = vadd.f32 %v297, %v427
    %v429 = vpop.f32.mrb[0].mxu0
    %430 = vmatprep.mubr.f32.mxu0 0.0
    %431 = vmatmul.mubr.f32.gmra.mrb[0].mxu0 %v313
    %v432 = vpop.f32.mrb[0].mxu0
    %v433 = vadd.f32 %v298, %v432
    %v434 = vpop.f32.mrb[0].mxu0
    %435 = vmatprep.mubr.f32.mxu0 0.0
    %436 = vmatmul.mubr.f32.gmra.mrb[0].mxu0 %v316
    %v437 = vpop.f32.mrb[0].mxu0
    %v438 = vadd.f32 %v299, %v437
    %v439 = vpop.f32.mrb[0].mxu0
    %440 = vmatprep.mubr.f32.mxu0 0.0
    %441 = vmatmul.mubr.f32.gmra.mrb[0].mxu0 %v319
    %v442 = vpop.f32.mrb[0].mxu0
    %v443 = vadd.f32 %v300, %v442
    %v444 = vpop.f32.mrb[0].mxu0
    %445 = vmatprep.mubr.f32.mxu0 0.0
    %446 = vmatmul.mubr.f32.gmra.mrb[0].mxu0 %v322
    %v447 = vpop.f32.mrb[0].mxu0
    %v448 = vadd.f32 %v301, %v447
    %v449 = vpop.f32.mrb[0].mxu0
    %450 = vmatprep.mubr.f32.mxu0 0.0
    %451 = vmatmul.mubr.f32.gmra.mrb[0].mxu0 %v325
    %v452 = vpop.f32.mrb[0].mxu0
    %v453 = vadd.f32 %v302, %v452
    %v454 = vpop.f32.mrb[0].mxu0
    %455 = vdwg.mxu0
    %vm456 = vcmask 523264
    %v457 = vsel %vm456, %v418, -inf
    %458 = vmax.xlane.f32.xlu0 %v457
    %v459 = vpop.xlane.xlu0 %458
    %v460 = vsel %vm456, %v423, -inf
    %461 = vmax.xlane.f32.xlu0 %v460
    %v462 = vpop.xlane.xlu0 %461
    %v463 = vsel %vm456, %v428, -inf
    %464 = vmax.xlane.f32.xlu0 %v463
    %v465 = vpop.xlane.xlu0 %464
    %v466 = vsel %vm456, %v433, -inf
    %467 = vmax.xlane.f32.xlu0 %v466
    %v468 = vpop.xlane.xlu0 %467
    %v469 = vsel %vm456, %v438, -inf
    %470 = vmax.xlane.f32.xlu0 %v469
    %v471 = vpop.xlane.xlu0 %470
    %v472 = vsel %vm456, %v443, -inf
    %473 = vmax.xlane.f32.xlu0 %v472
    %v474 = vpop.xlane.xlu0 %473
    %v475 = vsel %vm456, %v448, -inf
    %476 = vmax.xlane.f32.xlu0 %v475
    %v477 = vpop.xlane.xlu0 %476
    %v478 = vsel %vm456, %v453, -inf
    %479 = vmax.xlane.f32.xlu0 %v478
    %v480 = vpop.xlane.xlu0 %479
    %v481 = vsub.f32 %v418, %v459
    %v482 = vsub.f32 %v423, %v462
    %v483 = vsub.f32 %v428, %v465
    %v484 = vsub.f32 %v433, %v468
    %v485 = vsub.f32 %v438, %v471
    %v486 = vsub.f32 %v443, %v474
    %v487 = vsub.f32 %v448, %v477
    %v488 = vsub.f32 %v453, %v480
    %v489 = vmul.f32 %v481, 1.442695
    %v490 = vpow.pop %v489
    %v491 = vmul.f32 %v482, 1.442695
    %v492 = vpow.pop %v491
    %v493 = vmul.f32 %v483, 1.442695
    %v494 = vpow.pop %v493
    %v495 = vmul.f32 %v484, 1.442695
    %v496 = vpow.pop %v495
    %v497 = vmul.f32 %v485, 1.442695
    %v498 = vpow.pop %v497
    %v499 = vmul.f32 %v486, 1.442695
    %v500 = vpow.pop %v499
    %v501 = vmul.f32 %v487, 1.442695
    %v502 = vpow.pop %v501
    %v503 = vmul.f32 %v488, 1.442695
    %v504 = vpow.pop %v503
    %v505 = vsel %vm456, %v490, 0.0
    %506 = vadd.xlane.f32.xlu0 %v505
    %v507 = vpop.xlane.xlu0 %506
    %v508 = vsel %vm456, %v492, 0.0
    %509 = vadd.xlane.f32.xlu0 %v508
    %v510 = vpop.xlane.xlu0 %509
    %v511 = vsel %vm456, %v494, 0.0
    %512 = vadd.xlane.f32.xlu0 %v511
    %v513 = vpop.xlane.xlu0 %512
    %v514 = vsel %vm456, %v496, 0.0
    %515 = vadd.xlane.f32.xlu0 %v514
    %v516 = vpop.xlane.xlu0 %515
    %v517 = vsel %vm456, %v498, 0.0
    %518 = vadd.xlane.f32.xlu0 %v517
    %v519 = vpop.xlane.xlu0 %518
    %v520 = vsel %vm456, %v500, 0.0
    %521 = vadd.xlane.f32.xlu0 %v520
    %v522 = vpop.xlane.xlu0 %521
    %v523 = vsel %vm456, %v502, 0.0
    %524 = vadd.xlane.f32.xlu0 %v523
    %v525 = vpop.xlane.xlu0 %524
    %v526 = vsel %vm456, %v504, 0.0
    %527 = vadd.xlane.f32.xlu0 %v526
    %v528 = vpop.xlane.xlu0 %527
    %v529 = vrcp.pop %v507
    %v530 = vrcp.pop %v510
    %v531 = vrcp.pop %v513
    %v532 = vrcp.pop %v516
    %v533 = vrcp.pop %v519
    %v534 = vrcp.pop %v522
    %v535 = vrcp.pop %v525
    %v536 = vrcp.pop %v528
    %v537 = vmul.f32 %v490, %v529
    %v538 = vmul.f32 %v492, %v530
    %v539 = vmul.f32 %v494, %v531
    %v540 = vmul.f32 %v496, %v532
    %v541 = vmul.f32 %v498, %v533
    %v542 = vmul.f32 %v500, %v534
    %v543 = vmul.f32 %v502, %v535
    %v544 = vmul.f32 %v504, %v536
    %v546 = vsel %vm456, %v537, 0
    %v549 = vsel %vm456, %v538, 0
    %v552 = vsel %vm456, %v539, 0
    %v555 = vsel %vm456, %v540, 0
    %v558 = vsel %vm456, %v541, 0
    %v561 = vsel %vm456, %v542, 0
    %v564 = vsel %vm456, %v543, 0
    %v567 = vsel %vm456, %v544, 0
    %569 = vmatprep.subr.mxu0 0.0
    %570 = vmatpush1.msra.mxu0 %v287
    %571 = vmatprep.subr.mxu0 0.0
    %572 = vmatpush1.msra.mxu0 %v288
    %573 = vmatprep.subr.mxu0 0.0
    %574 = vmatpush1.msra.mxu0 %v289
    %575 = vmatprep.subr.mxu0 0.0
    %576 = vmatpush1.msra.mxu0 %v290
    %577 = vmatprep.subr.mxu0 0.0
    %578 = vmatpush1.msra.mxu0 %v291
    %579 = vmatprep.subr.mxu0 0.0
    %580 = vmatpush1.msra.mxu0 %v292
    %581 = vmatprep.subr.mxu0 0.0
    %582 = vmatpush1.msra.mxu0 %v293
    %583 = vmatprep.subr.mxu0 0.0
    %584 = vmatpush1.msra.mxu0 %v294
    %585 = vmatprep.subr.mxu0 0.0
    %586 = vmatpush1.msra.mxu0 0.0
    %587 = vmatprep.subr.mxu0 0.0
    %588 = vmatpush1.msra.mxu0 0.0
    %589 = vmatprep.subr.mxu0 0.0
    %590 = vmatpush1.msra.mxu0 0.0
    %591 = vmatprep.subr.mxu0 0.0
    %592 = vmatpush1.msra.mxu0 0.0
    %593 = vmatprep.subr.mxu0 0.0
    %594 = vmatpush1.msra.mxu0 0.0
    %595 = vmatprep.subr.mxu0 0.0
    %596 = vmatpush1.msra.mxu0 0.0
    %597 = vmatprep.subr.mxu0 0.0
    %598 = vmatpush1.msra.mxu0 0.0
    %599 = vmatprep.subr.mxu0 0.0
    %600 = vmatpush1.msra.mxu0 0.0
    %601 = vmatprep.subr.mxu0 0.0
    %602 = vmatpush1.msra.mxu0 0.0
    %603 = vmatprep.subr.mxu0 0.0
    %604 = vmatpush1.msra.mxu0 0.0
    %605 = vmatprep.subr.mxu0 0.0
    %606 = vmatpush1.msra.mxu0 0.0
    %607 = vmatprep.subr.mxu0 0.0
    %608 = vmatpush1.msra.mxu0 0.0
    %609 = vmatprep.subr.mxu0 0.0
    %610 = vmatpush1.msra.mxu0 0.0
    %611 = vmatprep.subr.mxu0 0.0
    %612 = vmatpush1.msra.mxu0 0.0
    %613 = vmatprep.subr.mxu0 0.0
    %614 = vmatpush1.msra.mxu0 0.0
    %615 = vmatprep.subr.mxu0 0.0
    %616 = vmatpush1.msra.mxu0 0.0
    %617 = vmatprep.subr.mxu0 0.0
    %618 = vmatpush1.msra.mxu0 0.0
    %619 = vmatprep.subr.mxu0 0.0
    %620 = vmatpush1.msra.mxu0 0.0
    %621 = vmatprep.subr.mxu0 0.0
    %622 = vmatpush1.msra.mxu0 0.0
    %623 = vmatprep.subr.mxu0 0.0
    %624 = vmatpush1.msra.mxu0 0.0
    %625 = vmatprep.subr.mxu0 0.0
    %626 = vmatpush1.msra.mxu0 0.0
    %627 = vmatprep.subr.mxu0 0.0
    %628 = vmatpush1.msra.mxu0 0.0
    %629 = vmatprep.subr.mxu0 0.0
    %630 = vmatpush1.msra.mxu0 0.0
    %631 = vmatprep.subr.mxu0 0.0
    %632 = vmatpush1.msra.mxu0 0.0
    %633 = vmatprep.mubr.f32.mxu0 0.0
    %634 = vmatmul.mubr.f32.gmra.mrb[0].mxu0 %v546
    %v635 = vpop.f32.mrb[0].mxu0
    %v636 = vadd.f32 0.0, %v635
    %v637 = vpop.f32.mrb[0].mxu0
    %638 = vmatprep.mubr.f32.mxu0 0.0
    %639 = vmatmul.mubr.f32.gmra.mrb[0].mxu0 %v549
    %v640 = vpop.f32.mrb[0].mxu0
    %v641 = vadd.f32 0.0, %v640
    %v642 = vpop.f32.mrb[0].mxu0
    %643 = vmatprep.mubr.f32.mxu0 0.0
    %644 = vmatmul.mubr.f32.gmra.mrb[0].mxu0 %v552
    %v645 = vpop.f32.mrb[0].mxu0
    %v646 = vadd.f32 0.0, %v645
    %v647 = vpop.f32.mrb[0].mxu0
    %648 = vmatprep.mubr.f32.mxu0 0.0
    %649 = vmatmul.mubr.f32.gmra.mrb[0].mxu0 %v555
    %v650 = vpop.f32.mrb[0].mxu0
    %v651 = vadd.f32 0.0, %v650
    %v652 = vpop.f32.mrb[0].mxu0
    %653 = vmatprep.mubr.f32.mxu0 0.0
    %654 = vmatmul.mubr.f32.gmra.mrb[0].mxu0 %v558
    %v655 = vpop.f32.mrb[0].mxu0
    %v656 = vadd.f32 0.0, %v655
    %v657 = vpop.f32.mrb[0].mxu0
    %658 = vmatprep.mubr.f32.mxu0 0.0
    %659 = vmatmul.mubr.f32.gmra.mrb[0].mxu0 %v561
    %v660 = vpop.f32.mrb[0].mxu0
    %v661 = vadd.f32 0.0, %v660
    %v662 = vpop.f32.mrb[0].mxu0
    %663 = vmatprep.mubr.f32.mxu0 0.0
    %664 = vmatmul.mubr.f32.gmra.mrb[0].mxu0 %v564
    %v665 = vpop.f32.mrb[0].mxu0
    %v666 = vadd.f32 0.0, %v665
    %v667 = vpop.f32.mrb[0].mxu0
    %668 = vmatprep.mubr.f32.mxu0 0.0
    %669 = vmatmul.mubr.f32.gmra.mrb[0].mxu0 %v567
    %v670 = vpop.f32.mrb[0].mxu0
    %v671 = vadd.f32 0.0, %v670
    %v672 = vpop.f32.mrb[0].mxu0
    %673 = vdwg.mxu0
    %674 = vst.msk [vmem:[#allocation5] sm:$0xff] %vm178, %v636
    %675 = vst.msk [vmem:[#allocation5 + $0x8] sm:$0xff] %vm178, %v641
    %678 = vrot.lane.b32.xlu0 %v646, 8
    %v679 = vpop.permute.xlu0 %678
    %680 = vrot.lane.b32.xlu0 %v651, 8
    %v681 = vpop.permute.xlu0 %680
    %vm684 = vcmask 130112
    %685 = vst.msk [vmem:[#allocation5] sm:$0xff] %vm684, %v679
    %686 = vst.msk [vmem:[#allocation5 + $0x8] sm:$0xff] %vm684, %v681
    %689 = vrot.lane.b32.xlu0 %v656, 16
    %v690 = vpop.permute.xlu0 %689
    %691 = vrot.lane.b32.xlu0 %v661, 16
    %v692 = vpop.permute.xlu0 %691
    %vm695 = vcmask 195712
    %696 = vst.msk [vmem:[#allocation5] sm:$0xff] %vm695, %v690
    %697 = vst.msk [vmem:[#allocation5 + $0x8] sm:$0xff] %vm695, %v692
    %700 = vrot.lane.b32.xlu0 %v666, 24
    %v701 = vpop.permute.xlu0 %700
    %702 = vrot.lane.b32.xlu0 %v671, 24
    %v703 = vpop.permute.xlu0 %702
    %vm706 = vcmask 261312
    %707 = vst.msk [vmem:[#allocation5] sm:$0xff] %vm706, %v701
    %708 = vst.msk [vmem:[#allocation5 + $0x8] sm:$0xff] %vm706, %v703
    %v709 = vld [vmem:[#allocation5] sm:$0xff]
    %v710 = vld [vmem:[#allocation5 + $0x8] sm:$0xff]
    %v711 = vld [vmem:[#allocation9] sm:$0xff]
    %v712 = vld [vmem:[#allocation9 + $0x8] sm:$0xff]
    %v713 = vld [vmem:[#allocation9 + $0x10] sm:$0xff]
    %v714 = vld [vmem:[#allocation9 + $0x18] sm:$0xff]
    %v715 = vld [vmem:[%s7 + $0x1] sm:$0x1]
    %v716 = vlaneseq
    %v717 = vshrl.u32 %v716, 7
    %v718 = vsub.s32 0, %v717
    %v719 = vrot.slane %v715, %v718
    %v721 = vsel %vm84, %v709, 0
    %v724 = vsel %vm84, %v710, 0
    %726 = vmatprep.subr.mxu0 0.0
    %727 = vmatpush1.msra.mxu0 %v711
    %728 = vmatprep.subr.mxu0 0.0
    %729 = vmatpush1.msra.mxu0 %v712
    %730 = vmatprep.subr.mxu0 0.0
    %731 = vmatpush1.msra.mxu0 %v713
    %732 = vmatprep.subr.mxu0 0.0
    %733 = vmatpush1.msra.mxu0 %v714
    %734 = vmatprep.subr.mxu0 0.0
    %735 = vmatpush1.msra.mxu0 0.0
    %736 = vmatprep.subr.mxu0 0.0
    %737 = vmatpush1.msra.mxu0 0.0
    %738 = vmatprep.subr.mxu0 0.0
    %739 = vmatpush1.msra.mxu0 0.0
    %740 = vmatprep.subr.mxu0 0.0
    %741 = vmatpush1.msra.mxu0 0.0
    %742 = vmatprep.subr.mxu0 0.0
    %743 = vmatpush1.msra.mxu0 0.0
    %744 = vmatprep.subr.mxu0 0.0
    %745 = vmatpush1.msra.mxu0 0.0
    %746 = vmatprep.subr.mxu0 0.0
    %747 = vmatpush1.msra.mxu0 0.0
    %748 = vmatprep.subr.mxu0 0.0
    %749 = vmatpush1.msra.mxu0 0.0
    %750 = vmatprep.subr.mxu0 0.0
    %751 = vmatpush1.msra.mxu0 0.0
    %752 = vmatprep.subr.mxu0 0.0
    %753 = vmatpush1.msra.mxu0 0.0
    %754 = vmatprep.subr.mxu0 0.0
    %755 = vmatpush1.msra.mxu0 0.0
    %756 = vmatprep.subr.mxu0 0.0
    %757 = vmatpush1.msra.mxu0 0.0
    %758 = vmatprep.subr.mxu0 0.0
    %759 = vmatpush1.msra.mxu0 0.0
    %760 = vmatprep.subr.mxu0 0.0
    %761 = vmatpush1.msra.mxu0 0.0
    %762 = vmatprep.subr.mxu0 0.0
    %763 = vmatpush1.msra.mxu0 0.0
    %764 = vmatprep.subr.mxu0 0.0
    %765 = vmatpush1.msra.mxu0 0.0
    %766 = vmatprep.subr.mxu0 0.0
    %767 = vmatpush1.msra.mxu0 0.0
    %768 = vmatprep.subr.mxu0 0.0
    %769 = vmatpush1.msra.mxu0 0.0
    %770 = vmatprep.subr.mxu0 0.0
    %771 = vmatpush1.msra.mxu0 0.0
    %772 = vmatprep.subr.mxu0 0.0
    %773 = vmatpush1.msra.mxu0 0.0
    %774 = vmatprep.subr.mxu0 0.0
    %775 = vmatpush1.msra.mxu0 0.0
    %776 = vmatprep.subr.mxu0 0.0
    %777 = vmatpush1.msra.mxu0 0.0
    %778 = vmatprep.subr.mxu0 0.0
    %779 = vmatpush1.msra.mxu0 0.0
    %780 = vmatprep.subr.mxu0 0.0
    %781 = vmatpush1.msra.mxu0 0.0
    %782 = vmatprep.subr.mxu0 0.0
    %783 = vmatpush1.msra.mxu0 0.0
    %784 = vmatprep.subr.mxu0 0.0
    %785 = vmatpush1.msra.mxu0 0.0
    %786 = vmatprep.subr.mxu0 0.0
    %787 = vmatpush1.msra.mxu0 0.0
    %788 = vmatprep.subr.mxu0 0.0
    %789 = vmatpush1.msra.mxu0 0.0
    %790 = vmatprep.mubr.f32.mxu0 0.0
    %791 = vmatmul.mubr.f32.gmra.mrb[0].mxu0 %v721
    %v792 = vpop.f32.mrb[0].mxu0
    %v793 = vadd.f32 %v719, %v792
    %v794 = vpop.f32.mrb[0].mxu0
    %795 = vmatprep.mubr.f32.mxu0 0.0
    %796 = vmatmul.mubr.f32.gmra.mrb[0].mxu0 %v724
    %v797 = vpop.f32.mrb[0].mxu0
    %v798 = vadd.f32 %v719, %v797
    %v799 = vpop.f32.mrb[0].mxu0
    %800 = vdwg.mxu0
    %v801 = vmul.f32 %v793, %v169
    %v802 = vmul.f32 %v798, %v174
    %v803 = vadd.f32 %v801, %v71
    %v804 = vadd.f32 %v802, %v72
    %v805 = vsel %vm84, %v803, 0.0
    %806 = vadd.xlane.f32.xlu0 %v805
    %v807 = vpop.xlane.xlu0 %806
    %v808 = vsel %vm84, %v804, 0.0
    %809 = vadd.xlane.f32.xlu0 %v808
    %v810 = vpop.xlane.xlu0 %809
    %v811 = vrcp.pop 32.0
    %v812 = vmul.f32 %v807, %v811
    %v813 = vmul.f32 %v810, %v811
    %v814 = vsub.f32 %v803, %v812
    %v815 = vsub.f32 %v804, %v813
    %v816 = vmul.f32 %v814, %v814
    %v817 = vmul.f32 %v815, %v815
    %v818 = vsel %vm84, %v816, 0.0
    %819 = vadd.xlane.f32.xlu0 %v818
    %v820 = vpop.xlane.xlu0 %819
    %v821 = vsel %vm84, %v817, 0.0
    %822 = vadd.xlane.f32.xlu0 %v821
    %v823 = vpop.xlane.xlu0 %822
    %v824 = vmul.f32 %v820, %v811
    %v825 = vmul.f32 %v823, %v811
    %v826 = vadd.f32 %v824, 1e-06
    %v827 = vadd.f32 %v825, 1e-06
    %v828 = vrsqrt.pop %v826
    %v829 = vrsqrt.pop %v827
    %v830 = vmul.f32 %v814, %v828
    %v831 = vmul.f32 %v815, %v829
    %v832 = vld [vmem:[%s7 + $0x4] sm:$0x1]
    %v833 = vlaneseq
    %v834 = vshrl.u32 %v833, 7
    %v835 = vsub.s32 0, %v834
    %v836 = vrot.slane %v832, %v835
    %v837 = vmul.f32 %v830, %v836
    %v838 = vmul.f32 %v831, %v836
    %v839 = vld [vmem:[%s7 + $0x5] sm:$0x1]
    %v840 = vlaneseq
    %v841 = vshrl.u32 %v840, 7
    %v842 = vsub.s32 0, %v841
    %v843 = vrot.slane %v839, %v842
    %v844 = vadd.f32 %v837, %v843
    %v845 = vadd.f32 %v838, %v843
    %v846 = vld [vmem:[#allocation11] sm:$0xff]
    %v847 = vld [vmem:[#allocation11 + $0x8] sm:$0xff]
    %v848 = vld [vmem:[#allocation11 + $0x10] sm:$0xff]
    %v849 = vld [vmem:[#allocation11 + $0x18] sm:$0xff]
    %v850 = vld [vmem:[%s7 + $0x2] sm:$0x1]
    %v851 = vlaneseq
    %v852 = vshrl.u32 %v851, 7
    %v853 = vsub.s32 0, %v852
    %v854 = vrot.slane %v850, %v853
    %v856 = vsel %vm84, %v844, 0
    %v859 = vsel %vm84, %v845, 0
    %861 = vmatprep.subr.mxu0 0.0
    %862 = vmatpush1.msra.mxu0 %v846
    %863 = vmatprep.subr.mxu0 0.0
    %864 = vmatpush1.msra.mxu0 %v847
    %865 = vmatprep.subr.mxu0 0.0
    %866 = vmatpush1.msra.mxu0 %v848
    %867 = vmatprep.subr.mxu0 0.0
    %868 = vmatpush1.msra.mxu0 %v849
    %869 = vmatprep.subr.mxu0 0.0
    %870 = vmatpush1.msra.mxu0 0.0
    %871 = vmatprep.subr.mxu0 0.0
    %872 = vmatpush1.msra.mxu0 0.0
    %873 = vmatprep.subr.mxu0 0.0
    %874 = vmatpush1.msra.mxu0 0.0
    %875 = vmatprep.subr.mxu0 0.0
    %876 = vmatpush1.msra.mxu0 0.0
    %877 = vmatprep.subr.mxu0 0.0
    %878 = vmatpush1.msra.mxu0 0.0
    %879 = vmatprep.subr.mxu0 0.0
    %880 = vmatpush1.msra.mxu0 0.0
    %881 = vmatprep.subr.mxu0 0.0
    %882 = vmatpush1.msra.mxu0 0.0
    %883 = vmatprep.subr.mxu0 0.0
    %884 = vmatpush1.msra.mxu0 0.0
    %885 = vmatprep.subr.mxu0 0.0
    %886 = vmatpush1.msra.mxu0 0.0
    %887 = vmatprep.subr.mxu0 0.0
    %888 = vmatpush1.msra.mxu0 0.0
    %889 = vmatprep.subr.mxu0 0.0
    %890 = vmatpush1.msra.mxu0 0.0
    %891 = vmatprep.subr.mxu0 0.0
    %892 = vmatpush1.msra.mxu0 0.0
    %893 = vmatprep.subr.mxu0 0.0
    %894 = vmatpush1.msra.mxu0 0.0
    %895 = vmatprep.subr.mxu0 0.0
    %896 = vmatpush1.msra.mxu0 0.0
    %897 = vmatprep.subr.mxu0 0.0
    %898 = vmatpush1.msra.mxu0 0.0
    %899 = vmatprep.subr.mxu0 0.0
    %900 = vmatpush1.msra.mxu0 0.0
    %901 = vmatprep.subr.mxu0 0.0
    %902 = vmatpush1.msra.mxu0 0.0
    %903 = vmatprep.subr.mxu0 0.0
    %904 = vmatpush1.msra.mxu0 0.0
    %905 = vmatprep.subr.mxu0 0.0
    %906 = vmatpush1.msra.mxu0 0.0
    %907 = vmatprep.subr.mxu0 0.0
    %908 = vmatpush1.msra.mxu0 0.0
    %909 = vmatprep.subr.mxu0 0.0
    %910 = vmatpush1.msra.mxu0 0.0
    %911 = vmatprep.subr.mxu0 0.0
    %912 = vmatpush1.msra.mxu0 0.0
    %913 = vmatprep.subr.mxu0 0.0
    %914 = vmatpush1.msra.mxu0 0.0
    %915 = vmatprep.subr.mxu0 0.0
    %916 = vmatpush1.msra.mxu0 0.0
    %917 = vmatprep.subr.mxu0 0.0
    %918 = vmatpush1.msra.mxu0 0.0
    %919 = vmatprep.subr.mxu0 0.0
    %920 = vmatpush1.msra.mxu0 0.0
    %921 = vmatprep.subr.mxu0 0.0
    %922 = vmatpush1.msra.mxu0 0.0
    %923 = vmatprep.subr.mxu0 0.0
    %924 = vmatpush1.msra.mxu0 0.0
    %925 = vmatprep.mubr.f32.mxu0 0.0
    %926 = vmatmul.mubr.f32.gmra.mrb[0].mxu0 %v856
    %v927 = vpop.f32.mrb[0].mxu0
    %v928 = vadd.f32 %v854, %v927
    %v929 = vpop.f32.mrb[0].mxu0
    %930 = vmatprep.mubr.f32.mxu0 0.0
    %931 = vmatmul.mubr.f32.gmra.mrb[0].mxu0 %v859
    %v932 = vpop.f32.mrb[0].mxu0
    %v933 = vadd.f32 %v854, %v932
    %v934 = vpop.f32.mrb[0].mxu0
    %935 = vdwg.mxu0
    %v936 = vmax.f32 %v928, 0.0
    %v937 = vmax.f32 %v933, 0.0
    %v938 = vld [vmem:[%s6] sm:$0xff]
    %v939 = vld [vmem:[%s6 + $0x8] sm:$0xff]
    %v940 = vld [vmem:[%s6 + $0x10] sm:$0xff]
    %v941 = vld [vmem:[%s6 + $0x18] sm:$0xff]
    %v942 = vld [vmem:[%s6 + $0x20] sm:$0xff]
    %v943 = vld [vmem:[%s6 + $0x28] sm:$0xff]
    %v944 = vld [vmem:[%s6 + $0x30] sm:$0xff]
    %v945 = vld [vmem:[%s6 + $0x38] sm:$0xff]
    %v946 = vld [vmem:[%s7 + $0x3] sm:$0x1]
    %v947 = vlaneseq
    %v948 = vshrl.u32 %v947, 7
    %v949 = vsub.s32 0, %v948
    %v950 = vrot.slane %v946, %v949
    %v952 = vsel %vm456, %v936, 0
    %v955 = vsel %vm456, %v937, 0
    %957 = vmatprep.subr.mxu0 0.0
    %958 = vmatpush1.msra.mxu0 %v938
    %959 = vmatprep.subr.mxu0 0.0
    %960 = vmatpush1.msra.mxu0 %v939
    %961 = vmatprep.subr.mxu0 0.0
    %962 = vmatpush1.msra.mxu0 %v940
    %963 = vmatprep.subr.mxu0 0.0
    %964 = vmatpush1.msra.mxu0 %v941
    %965 = vmatprep.subr.mxu0 0.0
    %966 = vmatpush1.msra.mxu0 %v942
    %967 = vmatprep.subr.mxu0 0.0
    %968 = vmatpush1.msra.mxu0 %v943
    %969 = vmatprep.subr.mxu0 0.0
    %970 = vmatpush1.msra.mxu0 %v944
    %971 = vmatprep.subr.mxu0 0.0
    %972 = vmatpush1.msra.mxu0 %v945
    %973 = vmatprep.subr.mxu0 0.0
    %974 = vmatpush1.msra.mxu0 0.0
    %975 = vmatprep.subr.mxu0 0.0
    %976 = vmatpush1.msra.mxu0 0.0
    %977 = vmatprep.subr.mxu0 0.0
    %978 = vmatpush1.msra.mxu0 0.0
    %979 = vmatprep.subr.mxu0 0.0
    %980 = vmatpush1.msra.mxu0 0.0
    %981 = vmatprep.subr.mxu0 0.0
    %982 = vmatpush1.msra.mxu0 0.0
    %983 = vmatprep.subr.mxu0 0.0
    %984 = vmatpush1.msra.mxu0 0.0
    %985 = vmatprep.subr.mxu0 0.0
    %986 = vmatpush1.msra.mxu0 0.0
    %987 = vmatprep.subr.mxu0 0.0
    %988 = vmatpush1.msra.mxu0 0.0
    %989 = vmatprep.subr.mxu0 0.0
    %990 = vmatpush1.msra.mxu0 0.0
    %991 = vmatprep.subr.mxu0 0.0
    %992 = vmatpush1.msra.mxu0 0.0
    %993 = vmatprep.subr.mxu0 0.0
    %994 = vmatpush1.msra.mxu0 0.0
    %995 = vmatprep.subr.mxu0 0.0
    %996 = vmatpush1.msra.mxu0 0.0
    %997 = vmatprep.subr.mxu0 0.0
    %998 = vmatpush1.msra.mxu0 0.0
    %999 = vmatprep.subr.mxu0 0.0
    %1000 = vmatpush1.msra.mxu0 0.0
    %1001 = vmatprep.subr.mxu0 0.0
    %1002 = vmatpush1.msra.mxu0 0.0
    %1003 = vmatprep.subr.mxu0 0.0
    %1004 = vmatpush1.msra.mxu0 0.0
    %1005 = vmatprep.subr.mxu0 0.0
    %1006 = vmatpush1.msra.mxu0 0.0
    %1007 = vmatprep.subr.mxu0 0.0
    %1008 = vmatpush1.msra.mxu0 0.0
    %1009 = vmatprep.subr.mxu0 0.0
    %1010 = vmatpush1.msra.mxu0 0.0
    %1011 = vmatprep.subr.mxu0 0.0
    %1012 = vmatpush1.msra.mxu0 0.0
    %1013 = vmatprep.subr.mxu0 0.0
    %1014 = vmatpush1.msra.mxu0 0.0
    %1015 = vmatprep.subr.mxu0 0.0
    %1016 = vmatpush1.msra.mxu0 0.0
    %1017 = vmatprep.subr.mxu0 0.0
    %1018 = vmatpush1.msra.mxu0 0.0
    %1019 = vmatprep.subr.mxu0 0.0
    %1020 = vmatpush1.msra.mxu0 0.0
    %1021 = vmatprep.mubr.f32.mxu0 0.0
    %1022 = vmatmul.mubr.f32.gmra.mrb[0].mxu0 %v952
    %v1023 = vpop.f32.mrb[0].mxu0
    %v1024 = vadd.f32 %v950, %v1023
    %v1025 = vpop.f32.mrb[0].mxu0
    %1026 = vmatprep.mubr.f32.mxu0 0.0
    %1027 = vmatmul.mubr.f32.gmra.mrb[0].mxu0 %v955
    %v1028 = vpop.f32.mrb[0].mxu0
    %v1029 = vadd.f32 %v950, %v1028
    %v1030 = vpop.f32.mrb[0].mxu0
    %1031 = vdwg.mxu0
    %v1032 = vmul.f32 %v1024, %v169
    %v1033 = vmul.f32 %v1029, %v174
    %v1034 = vadd.f32 %v1032, %v844
    %v1035 = vadd.f32 %v1033, %v845
    %v1036 = vsel %vm84, %v1034, 0.0
    %1037 = vadd.xlane.f32.xlu0 %v1036
    %v1038 = vpop.xlane.xlu0 %1037
    %v1039 = vsel %vm84, %v1035, 0.0
    %1040 = vadd.xlane.f32.xlu0 %v1039
    %v1041 = vpop.xlane.xlu0 %1040
    %v1042 = vmul.f32 %v1038, %v811
    %v1043 = vmul.f32 %v1041, %v811
    %v1044 = vsub.f32 %v1034, %v1042
    %v1045 = vsub.f32 %v1035, %v1043
    %v1046 = vmul.f32 %v1044, %v1044
    %v1047 = vmul.f32 %v1045, %v1045
    %v1048 = vsel %vm84, %v1046, 0.0
    %1049 = vadd.xlane.f32.xlu0 %v1048
    %v1050 = vpop.xlane.xlu0 %1049
    %v1051 = vsel %vm84, %v1047, 0.0
    %1052 = vadd.xlane.f32.xlu0 %v1051
    %v1053 = vpop.xlane.xlu0 %1052
    %v1054 = vmul.f32 %v1050, %v811
    %v1055 = vmul.f32 %v1053, %v811
    %v1056 = vadd.f32 %v1054, 1e-06
    %v1057 = vadd.f32 %v1055, 1e-06
    %v1058 = vrsqrt.pop %v1056
    %v1059 = vrsqrt.pop %v1057
    %v1060 = vmul.f32 %v1044, %v1058
    %v1061 = vmul.f32 %v1045, %v1059
    %v1062 = vld [vmem:[%s7 + $0x6] sm:$0x1]
    %v1063 = vlaneseq
    %v1064 = vshrl.u32 %v1063, 7
    %v1065 = vsub.s32 0, %v1064
    %v1066 = vrot.slane %v1062, %v1065
    %v1067 = vmul.f32 %v1060, %v1066
    %v1068 = vmul.f32 %v1061, %v1066
    %v1069 = vld [vmem:[%s7 + $0x7] sm:$0x1]
    %v1070 = vlaneseq
    %v1071 = vshrl.u32 %v1070, 7
    %v1072 = vsub.s32 0, %v1071
    %v1073 = vrot.slane %v1069, %v1072
    %v1074 = vadd.f32 %v1067, %v1073
    %v1075 = vadd.f32 %v1068, %v1073
    %1076 = vst.msk [vmem:[#allocation12] sm:$0xff] %vm84, %v1074
    %1077 = vst.msk [vmem:[#allocation12 + $0x8] sm:$0xff] %vm84, %v1075
    // Predicated region
    $region46: #{tpu_custom_call.1} parent=1 // pred_check
      _
    $region47: #{tpu_custom_call.1} parent=1 // pred_check_branch
      %1079 = sbr.rel (0) target = $region49
    $region48: #{tpu_custom_call.1} parent=1 // pred_region
      %s1081 = ssub.s32 256, 256
      %1082 = vsyncadd [#allocation8], %s1081
      %s1083 = sshll.u32 [#allocation12], 4
      %s1084 = int_to_ptr.vmem [resolvable:$true] %s1083
      %1089 = dma.vmem_to_hbm [thread:$0]  %s1084, 256, %s8, [#allocation8], 128, 128, 8
    $region49: #{tpu_custom_call.1} parent=1 // pred_fallthru
      _
    // Predicated region
    $region50: #{tpu_custom_call.1} parent=1 // pred_check
      _
    $region51: #{tpu_custom_call.1} parent=1 // pred_check_branch
      %1091 = sbr.rel (0) target = $region53
    $region52: #{tpu_custom_call.1} parent=1 // pred_region
      %1092 = dma.done [#allocation8], 256
    $region53: #{tpu_custom_call.1} parent=1 // pred_fallthru
      _
    %1093 = vsyncpa [#allocation7], 1
    %1094 = vsyncpa [#allocation10], 1
    %1095 = vsyncpa [#allocation8], 1

</llo_original>
